<compile_context>
chip_gen: v7x
topology: tpu7x:2x2x1
jax: 0.10.0
libtpu: 0.0.40
codegen_flags: <defaults>
</compile_context>

<pallas_src>
import functools

import numpy as np
import jax
import jax.numpy as jnp
from jax import lax
from jax.experimental import pallas as pl
from jax.experimental.pallas import tpu as pltpu

N_PAD = 128          # lane-dense padded width for the final logits
_NEG = -1e30


# ----------------------------------------------------------------------------
# The single fused Pallas kernel (TB images per grid step)
# ----------------------------------------------------------------------------
def _lenet_kernel(x_ref, t1_ref, b1_ref, t2_ref, b2_ref, p1sel_ref, c5sel_ref,
                  rowm_ref, fw1_ref, fb1_ref, fw2_ref, fb2_ref, o_ref,
                  *, n_out, tb):
    R1 = tb * 28          # rows of the conv1 stage (28 input rows per image)
    R2 = tb * 12          # rows of the conv2 stage (12 pool1 rows per image)

    # ---- conv1: ONE Toeplitz matmul, cols = i*256 + dx*128 + p1x*6 + o -----
    x = x_ref[0]                                              # (TB*28, 28*C)
    z1 = jnp.dot(x, t1_ref[...], preferred_element_type=jnp.float32)  # (R1,1280)
    c1 = z1[:, 0:256]
    for i in range(1, 5):                                     # vertical taps
        c1 = c1 + pltpu.roll(z1[:, i * 256:(i + 1) * 256], R1 - i, axis=0)

    # ---- maxpool1 (2x2/2): lane halves = horizontal partners, adjacent rows
    # are vertical partners; row compaction is a 0/1 selection matmul. -------
    hmax = jnp.maximum(c1[:, 0:128], c1[:, 128:256])
    vmax = jnp.maximum(hmax, pltpu.roll(hmax, R1 - 1, axis=0))
    pool1 = jnp.maximum(
        jnp.dot(p1sel_ref[...], vmax, preferred_element_type=jnp.float32)
        + b1_ref[...], 0.0)                                   # (R2,128), >= 0

    # ---- conv2: ONE Toeplitz matmul, cols = i2*128 + x2*16 + u -------------
    z2 = jnp.dot(pool1, t2_ref[...], preferred_element_type=jnp.float32)  # (R2,640)
    c2 = z2[:, 0:128]
    for i in range(1, 5):
        c2 = c2 + pltpu.roll(z2[:, i * 128:(i + 1) * 128], R2 - i, axis=0)
    rowvalid = rowm_ref[:, 0:1]          # 1.0 where conv2 row y2 < 8
    row_is7 = rowm_ref[:, 1:2]           # 1.0 where conv2 row y2 == 7
    c2 = jnp.maximum(c2 + b2_ref[...], 0.0) * rowvalid        # ReLU, zero junk rows

    # ---- maxpool2 (k=2, s=2, pad=1): padding members become 0 (safe, >=0) --
    lane = lax.broadcasted_iota(jnp.int32, (R2, 128), 1)
    shl = pltpu.roll(c2, 16, axis=1)                          # lane group x2 <- x2-1
    shl = jnp.where(lane >= 16, shl, 0.0)                     # mask wrapped lanes
    ax = jnp.maximum(c2, shl)                                 # horiz pool at x2=2*p2x
    hp = jnp.where(lane >= 112, c2, ax)                       # p2x==4 uses x2==7 alone
    vp = jnp.maximum(hp, pltpu.roll(hp, 1, axis=0))           # vert pool at y2=2*p2y
    vp = row_is7 * hp + (1.0 - row_is7) * vp                  # p2y==4 uses y2==7 alone

    # ---- pool2 row gather -> (TB*5, 128), fc1 as 5 accumulated GEMMs -------
    c5 = jnp.dot(c5sel_ref[...], vp, preferred_element_type=jnp.float32)
    h = fb1_ref[...]                                          # (1, 200)
    for p2y in range(5):
        h = h + jnp.dot(c5[p2y * tb:(p2y + 1) * tb, :], fw1_ref[p2y],
                        preferred_element_type=jnp.float32)
    h = jnp.maximum(h, 0.0)                                   # (TB, 200)

    # ---- fc2 + masked log-softmax over a lane-dense 128-wide row -----------
    logits = jnp.dot(h, fw2_ref[...], preferred_element_type=jnp.float32) + fb2_ref[...]
    col = lax.broadcasted_iota(jnp.int32, logits.shape, 1)
    logits = jnp.where(col < n_out, logits, _NEG)
    m = jnp.max(logits, axis=-1, keepdims=True)
    sh = logits - m
    lse = jnp.log(jnp.sum(jnp.exp(sh), axis=-1, keepdims=True))
    o_ref[0, :, :] = sh - lse                                 # (TB, 128) store


# ----------------------------------------------------------------------------
# One-time weight packing (numpy, outside the forward path)
# ----------------------------------------------------------------------------
def _build_t1(w1):
    """Toeplitz-packed conv1 weights: (28*C, 5*256).

    T1[x_in*C + c, i*256 + dx*128 + p1x*6 + o] = w1[o, c, i, x_in - (2*p1x+dx)]
    """
    C = w1.shape[1]
    t1 = np.zeros((28 * C, 5 * 256), np.float32)
    for i in range(5):
        for dx in range(2):
            for p1x in range(12):
                x1 = 2 * p1x + dx
                for j in range(5):
                    xin = x1 + j
                    for c in range(C):
                        for o in range(6):
                            t1[xin * C + c, i * 256 + dx * 128 + p1x * 6 + o] = w1[o, c, i, j]
    return t1


def _build_t2(w2):
    """Toeplitz-packed conv2 weights: (128, 5*128).

    T2[p1x*6 + v, i2*128 + x2*16 + u] = w2[u, v, i2, p1x - x2]
    """
    t2 = np.zeros((128, 5 * 128), np.float32)
    for i2 in range(5):
        for x2 in range(8):
            for j2 in range(5):
                p1x = x2 + j2
                for v in range(6):
                    for u in range(16):
                        t2[p1x * 6 + v, i2 * 128 + x2 * 16 + u] = w2[u, v, i2, j2]
    return t2


def _build_fw1(fw1):
    """fc1 weights keyed by pool2 row (p2y) and the lane layout of C5.

    Lane groups {1,3,5} of C5 carry junk -> their weight rows stay zero.
    """
    lanesel = (0, 2, 4, 6, 7)
    out = np.zeros((5, 128, 200), np.float32)
    for p2y in range(5):
        for p2x in range(5):
            for u in range(16):
                out[p2y, lanesel[p2x] * 16 + u, :] = fw1[:, u * 25 + p2y * 5 + p2x]
    return out


def prepare_params(params, n_pos_out):
    w1, b1, w2, b2, fw1, fb1, fw2, fb2 = (np.asarray(p, np.float32) for p in params)
    t1 = _build_t1(w1)
    t2 = _build_t2(w2)
    fw1s = _build_fw1(fw1)
    b1r = np.zeros((1, N_PAD), np.float32)
    b1r[0, :72] = np.tile(b1, 12)                  # lanes = p1x*6 + o
    b2r = np.tile(b2, 8).reshape(1, N_PAD).astype(np.float32)  # lanes = x2*16 + u
    fb1r = fb1.reshape(1, 200)
    fw2p = np.zeros((200, N_PAD), np.float32)
    fw2p[:, :n_pos_out] = fw2.T
    fb2r = np.zeros((1, N_PAD), np.float32)
    fb2r[0, :n_pos_out] = fb2
    return tuple(jnp.asarray(a) for a in (t1, b1r, t2, b2r, fw1s, fb1r, fw2p, fb2r))


def _tb_constants(tb):
    """Tiny TB-dependent 0/1 selection matrices and row masks."""
    p1sel = np.zeros((tb * 12, tb * 28), np.float32)      # pool1 row compaction
    for b in range(tb):
        for p in range(12):
            p1sel[b * 12 + p, b * 28 + 2 * p] = 1.0
    rowsel = (0, 2, 4, 6, 7)
    c5sel = np.zeros((tb * 5, tb * 12), np.float32)       # pool2 row gather
    for p2y in range(5):
        for b in range(tb):
            c5sel[p2y * tb + b, b * 12 + rowsel[p2y]] = 1.0
    rowm = np.zeros((tb * 12, 2), np.float32)             # [valid (y2<8), is y2==7]
    for r in range(tb * 12):
        y2 = r % 12
        rowm[r, 0] = 1.0 if y2 < 8 else 0.0
        rowm[r, 1] = 1.0 if y2 == 7 else 0.0
    return p1sel, c5sel, rowm


def _choose_tb(B):
    """Images per grid step.  Even (sublane-friendly); keep >=2 grid steps
    when the batch allows it so both v7x TensorCores get work."""
    if B >= 16:
        return 8
    if B >= 4:
        tb = (B + 1) // 2
        return tb + (tb % 2)
    return 2


# ----------------------------------------------------------------------------
# Forward pass: one fused pallas_call, grid parallel over batch tiles
# ----------------------------------------------------------------------------
def lenet_forward(x, prep, n_pos_out):
    t1, b1r, t2, b2r, fw1s, fb1r, fw2p, fb2r = prep
    B, C, H, W = x.shape
    assert H == 28 and W == 28, "linear1(in_features=400) requires 28x28 input"
    assert n_pos_out <= N_PAD

    tb = _choose_tb(B)
    g = -(-B // tb)
    bpad = g * tb
    if bpad != B:
        x = jnp.concatenate([x, jnp.zeros((bpad - B, C, H, W), x.dtype)], axis=0)

    # Only per-call XLA glue: raw-sized NCHW -> rows=(b,y), lanes=(x,c).
    xr = x.transpose(0, 2, 3, 1).reshape(g, tb * 28, 28 * C)

    p1sel, c5sel, rowm = (jnp.asarray(a) for a in _tb_constants(tb))

    out = pl.pallas_call(
        functools.partial(_lenet_kernel, n_out=n_pos_out, tb=tb),
        grid=(g,),
        out_shape=jax.ShapeDtypeStruct((g, tb, N_PAD), jnp.float32),
        in_specs=[
            pl.BlockSpec((1, tb * 28, 28 * C), lambda i: (i, 0, 0)),   # input rows
            pl.BlockSpec(t1.shape, lambda i: (0, 0)),                  # conv1 Toeplitz
            pl.BlockSpec(b1r.shape, lambda i: (0, 0)),                 # conv1 bias row
            pl.BlockSpec(t2.shape, lambda i: (0, 0)),                  # conv2 Toeplitz
            pl.BlockSpec(b2r.shape, lambda i: (0, 0)),                 # conv2 bias row
            pl.BlockSpec(p1sel.shape, lambda i: (0, 0)),               # pool1 row sel
            pl.BlockSpec(c5sel.shape, lambda i: (0, 0)),               # pool2 row sel
            pl.BlockSpec(rowm.shape, lambda i: (0, 0)),                # row masks
            pl.BlockSpec(fw1s.shape, lambda i: (0, 0, 0)),             # fc1 w (packed)
            pl.BlockSpec(fb1r.shape, lambda i: (0, 0)),                # fc1 b
            pl.BlockSpec(fw2p.shape, lambda i: (0, 0)),                # fc2 w (padded)
            pl.BlockSpec(fb2r.shape, lambda i: (0, 0)),                # fc2 b (padded)
        ],
        out_specs=pl.BlockSpec((1, tb, N_PAD), lambda i: (i, 0, 0)),
        compiler_params=pltpu.CompilerParams(
            dimension_semantics=("parallel",),
            vmem_limit_bytes=32 * 1024 * 1024,
        ),
    )(xr, t1, b1r, t2, b2r, p1sel, c5sel, rowm, fw1s, fb1r, fw2p, fb2r)

    return out.reshape(bpad, N_PAD)[:B, :n_pos_out]


# ----------------------------------------------------------------------------
# Deterministic parameter init (same shapes as the PyTorch module)
# ----------------------------------------------------------------------------
def init_params(key, n_channels, n_pos_out):
    ks = jax.random.split(key, 8)

    def u(k, shape, fan_in):
        bound = 1.0 / np.sqrt(fan_in)
        return jax.random.uniform(k, shape, jnp.float32, -bound, bound)

    w1 = u(ks[0], (6, n_channels, 5, 5), n_channels * 25)
    b1 = u(ks[1], (6,), n_channels * 25)
    w2 = u(ks[2], (16, 6, 5, 5), 6 * 25)
    b2 = u(ks[3], (16,), 6 * 25)
    fw1 = u(ks[4], (200, 400), 400)
    fb1 = u(ks[5], (200,), 400)
    fw2 = u(ks[6], (n_pos_out, 200), 200)
    fb2 = u(ks[7], (n_pos_out,), 200)
    return (w1, b1, w2, b2, fw1, fb1, fw2, fb2)


# ----------------------------------------------------------------------------
# Pure-JAX reference (PyTorch semantics) for the correctness check
# ----------------------------------------------------------------------------
def ref_forward(x, params):
    w1, b1, w2, b2, fw1, fb1, fw2, fb2 = params
    dn = ("NCHW", "OIHW", "NCHW")
    y = lax.conv_general_dilated(x, w1, (1, 1), "VALID", dimension_numbers=dn)
    y = jnp.maximum(y + b1[None, :, None, None], 0.0)
    y = lax.reduce_window(y, -jnp.inf, lax.max, (1, 1, 2, 2), (1, 1, 2, 2), "VALID")
    y = lax.conv_general_dilated(y, w2, (1, 1), "VALID", dimension_numbers=dn)
    y = jnp.maximum(y + b2[None, :, None, None], 0.0)
    y = lax.reduce_window(y, -jnp.inf, lax.max, (1, 1, 2, 2), (1, 1, 2, 2),
                          [(0, 0), (0, 0), (1, 1), (1, 1)])
    y = y.reshape(y.shape[0], -1)
    y = jnp.maximum(y @ fw1.T + fb1, 0.0)
    y = y @ fw2.T + fb2
    return jax.nn.log_softmax(y, axis=1)


# ----------------------------------------------------------------------------
if __name__ == "__main__":
    # linear1.in_features == 400 == 16*5*5 forces a 28x28 spatial input.
    B, n_channels, H, W = 2, 3, 28, 28
    n_pos_out = 10

    key = jax.random.PRNGKey(0)
    k_x, k_p = jax.random.split(key)
    x = jax.random.normal(k_x, (B, n_channels, H, W), dtype=jnp.float32)
    params = init_params(k_p, n_channels, n_pos_out)
    prep = prepare_params(params, n_pos_out)        # one-time weight packing

    fwd = jax.jit(functools.partial(lenet_forward, n_pos_out=n_pos_out))
    out = jax.block_until_ready(fwd(x, prep))
    ref = jax.block_until_ready(ref_forward(x, params))

    assert out.shape == (B, n_pos_out)
    np.testing.assert_allclose(np.asarray(out), np.asarray(ref), rtol=1e-4, atol=1e-4)
    print("KERNEL_OK")
</pallas_src>

<mosaic_0001>
module attributes {stable_mosaic.version = 11 : i64} {
  func.func @_lenet_kernel(%arg0: i32, %arg1: memref<1x56x84xf32, #tpu.memory_space<vmem>>, %arg2: memref<84x1280xf32, #tpu.memory_space<vmem>>, %arg3: memref<1x128xf32, #tpu.memory_space<vmem>>, %arg4: memref<128x640xf32, #tpu.memory_space<vmem>>, %arg5: memref<1x128xf32, #tpu.memory_space<vmem>>, %arg6: memref<24x56xf32, #tpu.memory_space<vmem>>, %arg7: memref<10x24xf32, #tpu.memory_space<vmem>>, %arg8: memref<24x2xf32, #tpu.memory_space<vmem>>, %arg9: memref<5x128x200xf32, #tpu.memory_space<vmem>>, %arg10: memref<1x200xf32, #tpu.memory_space<vmem>>, %arg11: memref<200x128xf32, #tpu.memory_space<vmem>>, %arg12: memref<1x128xf32, #tpu.memory_space<vmem>>, %arg13: memref<1x2x128xf32, #tpu.memory_space<vmem>>) attributes {dimension_semantics = [#tpu.dimension_semantics<parallel>], iteration_bounds = array<i64: 1>, scalar_prefetch = 0 : i64, scratch_operands = 0 : i64, tpu.core_type = #tpu.core_type<tc>, window_params = [{transform_indices = @transform_0, window_bounds = array<i64: 1, 56, 84>}, {pipeline_mode = #tpu.pipeline_mode<synchronous>, transform_indices = @transform_1, window_bounds = array<i64: 84, 1280>}, {pipeline_mode = #tpu.pipeline_mode<synchronous>, transform_indices = @transform_2, window_bounds = array<i64: 1, 128>}, {pipeline_mode = #tpu.pipeline_mode<synchronous>, transform_indices = @transform_3, window_bounds = array<i64: 128, 640>}, {pipeline_mode = #tpu.pipeline_mode<synchronous>, transform_indices = @transform_4, window_bounds = array<i64: 1, 128>}, {pipeline_mode = #tpu.pipeline_mode<synchronous>, transform_indices = @transform_5, window_bounds = array<i64: 24, 56>}, {pipeline_mode = #tpu.pipeline_mode<synchronous>, transform_indices = @transform_6, window_bounds = array<i64: 10, 24>}, {pipeline_mode = #tpu.pipeline_mode<synchronous>, transform_indices = @transform_7, window_bounds = array<i64: 24, 2>}, {pipeline_mode = #tpu.pipeline_mode<synchronous>, transform_indices = @transform_8, window_bounds = array<i64: 5, 128, 200>}, {pipeline_mode = #tpu.pipeline_mode<synchronous>, transform_indices = @transform_9, window_bounds = array<i64: 1, 200>}, {pipeline_mode = #tpu.pipeline_mode<synchronous>, transform_indices = @transform_10, window_bounds = array<i64: 200, 128>}, {pipeline_mode = #tpu.pipeline_mode<synchronous>, transform_indices = @transform_11, window_bounds = array<i64: 1, 128>}, {transform_indices = @transform_12, window_bounds = array<i64: 1, 2, 128>}]} {
    %c0 = arith.constant 0 : index
    %c0_0 = arith.constant 0 : index
    %c0_1 = arith.constant 0 : index
    %0 = vector.load %arg1[%c0, %c0_0, %c0_1] : memref<1x56x84xf32, #tpu.memory_space<vmem>>, vector<1x56x84xf32>
    %1 = vector.shape_cast %0 : vector<1x56x84xf32> to vector<56x84xf32>
    %c0_2 = arith.constant 0 : index
    %c0_3 = arith.constant 0 : index
    %2 = vector.load %arg2[%c0_2, %c0_3] : memref<84x1280xf32, #tpu.memory_space<vmem>>, vector<84x1280xf32>
    %cst = arith.constant dense<0.000000e+00> : vector<56x1280xf32>
    %3 = tpu.matmul %1, %2, %cst {dimension_numbers = #tpu.dot_dimension_numbers<[1], [0], [0], [1], [0, 0, 1, 1], [], []>} : vector<56x84xf32>, vector<84x1280xf32>, vector<56x1280xf32> -> vector<56x1280xf32>
    %4 = vector.extract_strided_slice %3 {offsets = [0, 0], sizes = [56, 256], strides = [1, 1]} : vector<56x1280xf32> to vector<56x256xf32>
    %5 = vector.extract_strided_slice %3 {offsets = [0, 256], sizes = [56, 256], strides = [1, 1]} : vector<56x1280xf32> to vector<56x256xf32>
    %c55_i32 = arith.constant 55 : i32
    %6 = tpu.dynamic_rotate %5 by %c55_i32 dim 0 : vector<56x256xf32>, i32 -> vector<56x256xf32>
    %7 = arith.addf %4, %6 : vector<56x256xf32>
    %8 = vector.extract_strided_slice %3 {offsets = [0, 512], sizes = [56, 256], strides = [1, 1]} : vector<56x1280xf32> to vector<56x256xf32>
    %c54_i32 = arith.constant 54 : i32
    %9 = tpu.dynamic_rotate %8 by %c54_i32 dim 0 : vector<56x256xf32>, i32 -> vector<56x256xf32>
    %10 = arith.addf %7, %9 : vector<56x256xf32>
    %11 = vector.extract_strided_slice %3 {offsets = [0, 768], sizes = [56, 256], strides = [1, 1]} : vector<56x1280xf32> to vector<56x256xf32>
    %c53_i32 = arith.constant 53 : i32
    %12 = tpu.dynamic_rotate %11 by %c53_i32 dim 0 : vector<56x256xf32>, i32 -> vector<56x256xf32>
    %13 = arith.addf %10, %12 : vector<56x256xf32>
    %14 = vector.extract_strided_slice %3 {offsets = [0, 1024], sizes = [56, 256], strides = [1, 1]} : vector<56x1280xf32> to vector<56x256xf32>
    %c52_i32 = arith.constant 52 : i32
    %15 = tpu.dynamic_rotate %14 by %c52_i32 dim 0 : vector<56x256xf32>, i32 -> vector<56x256xf32>
    %16 = arith.addf %13, %15 : vector<56x256xf32>
    %17 = vector.extract_strided_slice %16 {offsets = [0, 0], sizes = [56, 128], strides = [1, 1]} : vector<56x256xf32> to vector<56x128xf32>
    %18 = vector.extract_strided_slice %16 {offsets = [0, 128], sizes = [56, 128], strides = [1, 1]} : vector<56x256xf32> to vector<56x128xf32>
    %19 = arith.maximumf %17, %18 : vector<56x128xf32>
    %c55_i32_4 = arith.constant 55 : i32
    %20 = tpu.dynamic_rotate %19 by %c55_i32_4 dim 0 : vector<56x128xf32>, i32 -> vector<56x128xf32>
    %21 = arith.maximumf %19, %20 : vector<56x128xf32>
    %c0_5 = arith.constant 0 : index
    %c0_6 = arith.constant 0 : index
    %22 = vector.load %arg6[%c0_5, %c0_6] : memref<24x56xf32, #tpu.memory_space<vmem>>, vector<24x56xf32>
    %cst_7 = arith.constant dense<0.000000e+00> : vector<24x128xf32>
    %23 = tpu.matmul %22, %21, %cst_7 {dimension_numbers = #tpu.dot_dimension_numbers<[1], [0], [0], [1], [0, 0, 1, 1], [], []>} : vector<24x56xf32>, vector<56x128xf32>, vector<24x128xf32> -> vector<24x128xf32>
    %c0_8 = arith.constant 0 : index
    %c0_9 = arith.constant 0 : index
    %24 = vector.load %arg3[%c0_8, %c0_9] : memref<1x128xf32, #tpu.memory_space<vmem>>, vector<1x128xf32>
    %25 = vector.broadcast %24 : vector<1x128xf32> to vector<24x128xf32>
    %26 = arith.addf %23, %25 : vector<24x128xf32>
    %cst_10 = arith.constant 0.000000e+00 : f32
    %27 = vector.broadcast %cst_10 : f32 to vector<24x128xf32>
    %28 = arith.maximumf %26, %27 : vector<24x128xf32>
    %c0_11 = arith.constant 0 : index
    %c0_12 = arith.constant 0 : index
    %29 = vector.load %arg4[%c0_11, %c0_12] : memref<128x640xf32, #tpu.memory_space<vmem>>, vector<128x640xf32>
    %cst_13 = arith.constant dense<0.000000e+00> : vector<24x640xf32>
    %30 = tpu.matmul %28, %29, %cst_13 {dimension_numbers = #tpu.dot_dimension_numbers<[1], [0], [0], [1], [0, 0, 1, 1], [], []>} : vector<24x128xf32>, vector<128x640xf32>, vector<24x640xf32> -> vector<24x640xf32>
    %31 = vector.extract_strided_slice %30 {offsets = [0, 0], sizes = [24, 128], strides = [1, 1]} : vector<24x640xf32> to vector<24x128xf32>
    %32 = vector.extract_strided_slice %30 {offsets = [0, 128], sizes = [24, 128], strides = [1, 1]} : vector<24x640xf32> to vector<24x128xf32>
    %c23_i32 = arith.constant 23 : i32
    %33 = tpu.dynamic_rotate %32 by %c23_i32 dim 0 : vector<24x128xf32>, i32 -> vector<24x128xf32>
    %34 = arith.addf %31, %33 : vector<24x128xf32>
    %35 = vector.extract_strided_slice %30 {offsets = [0, 256], sizes = [24, 128], strides = [1, 1]} : vector<24x640xf32> to vector<24x128xf32>
    %c22_i32 = arith.constant 22 : i32
    %36 = tpu.dynamic_rotate %35 by %c22_i32 dim 0 : vector<24x128xf32>, i32 -> vector<24x128xf32>
    %37 = arith.addf %34, %36 : vector<24x128xf32>
    %38 = vector.extract_strided_slice %30 {offsets = [0, 384], sizes = [24, 128], strides = [1, 1]} : vector<24x640xf32> to vector<24x128xf32>
    %c21_i32 = arith.constant 21 : i32
    %39 = tpu.dynamic_rotate %38 by %c21_i32 dim 0 : vector<24x128xf32>, i32 -> vector<24x128xf32>
    %40 = arith.addf %37, %39 : vector<24x128xf32>
    %41 = vector.extract_strided_slice %30 {offsets = [0, 512], sizes = [24, 128], strides = [1, 1]} : vector<24x640xf32> to vector<24x128xf32>
    %c20_i32 = arith.constant 20 : i32
    %42 = tpu.dynamic_rotate %41 by %c20_i32 dim 0 : vector<24x128xf32>, i32 -> vector<24x128xf32>
    %43 = arith.addf %40, %42 : vector<24x128xf32>
    %c0_14 = arith.constant 0 : index
    %c0_15 = arith.constant 0 : index
    %44 = vector.load %arg8[%c0_14, %c0_15] : memref<24x2xf32, #tpu.memory_space<vmem>>, vector<24x1xf32>
    %c0_16 = arith.constant 0 : index
    %c1 = arith.constant 1 : index
    %45 = vector.load %arg8[%c0_16, %c1] : memref<24x2xf32, #tpu.memory_space<vmem>>, vector<24x1xf32>
    %c0_17 = arith.constant 0 : index
    %c0_18 = arith.constant 0 : index
    %46 = vector.load %arg5[%c0_17, %c0_18] : memref<1x128xf32, #tpu.memory_space<vmem>>, vector<1x128xf32>
    %47 = vector.broadcast %46 : vector<1x128xf32> to vector<24x128xf32>
    %48 = arith.addf %43, %47 : vector<24x128xf32>
    %cst_19 = arith.constant 0.000000e+00 : f32
    %49 = vector.broadcast %cst_19 : f32 to vector<24x128xf32>
    %50 = arith.maximumf %48, %49 : vector<24x128xf32>
    %51 = vector.broadcast %44 : vector<24x1xf32> to vector<24x128xf32>
    %52 = arith.mulf %50, %51 : vector<24x128xf32>
    %53 = tpu.iota {dimensions = array<i32: 1>} : vector<24x128xi32>
    %c16_i32 = arith.constant 16 : i32
    %54 = tpu.dynamic_rotate %52 by %c16_i32 dim 1 : vector<24x128xf32>, i32 -> vector<24x128xf32>
    %c16_i32_20 = arith.constant 16 : i32
    %55 = vector.broadcast %c16_i32_20 : i32 to vector<24x128xi32>
    %56 = arith.cmpi sge, %53, %55 : vector<24x128xi32>
    %cst_21 = arith.constant 0.000000e+00 : f32
    %57 = vector.broadcast %cst_21 : f32 to vector<24x128xf32>
    %58 = arith.select %56, %54, %57 : vector<24x128xi1>, vector<24x128xf32>
    %59 = arith.maximumf %52, %58 : vector<24x128xf32>
    %c112_i32 = arith.constant 112 : i32
    %60 = vector.broadcast %c112_i32 : i32 to vector<24x128xi32>
    %61 = arith.cmpi sge, %53, %60 : vector<24x128xi32>
    %62 = arith.select %61, %52, %59 : vector<24x128xi1>, vector<24x128xf32>
    %c1_i32 = arith.constant 1 : i32
    %63 = tpu.dynamic_rotate %62 by %c1_i32 dim 0 : vector<24x128xf32>, i32 -> vector<24x128xf32>
    %64 = arith.maximumf %62, %63 : vector<24x128xf32>
    %65 = vector.broadcast %45 : vector<24x1xf32> to vector<24x128xf32>
    %66 = arith.mulf %65, %62 : vector<24x128xf32>
    %cst_22 = arith.constant 1.000000e+00 : f32
    %67 = vector.broadcast %cst_22 : f32 to vector<24x1xf32>
    %68 = arith.subf %67, %45 : vector<24x1xf32>
    %69 = vector.broadcast %68 : vector<24x1xf32> to vector<24x128xf32>
    %70 = arith.mulf %69, %64 : vector<24x128xf32>
    %71 = arith.addf %66, %70 : vector<24x128xf32>
    %c0_23 = arith.constant 0 : index
    %c0_24 = arith.constant 0 : index
    %72 = vector.load %arg7[%c0_23, %c0_24] : memref<10x24xf32, #tpu.memory_space<vmem>>, vector<10x24xf32>
    %cst_25 = arith.constant dense<0.000000e+00> : vector<10x128xf32>
    %73 = tpu.matmul %72, %71, %cst_25 {dimension_numbers = #tpu.dot_dimension_numbers<[1], [0], [0], [1], [0, 0, 1, 1], [], []>} : vector<10x24xf32>, vector<24x128xf32>, vector<10x128xf32> -> vector<10x128xf32>
    %c0_26 = arith.constant 0 : index
    %c0_27 = arith.constant 0 : index
    %74 = vector.load %arg10[%c0_26, %c0_27] : memref<1x200xf32, #tpu.memory_space<vmem>>, vector<1x200xf32>
    %75 = vector.extract_strided_slice %73 {offsets = [0, 0], sizes = [2, 128], strides = [1, 1]} : vector<10x128xf32> to vector<2x128xf32>
    %c0_28 = arith.constant 0 : index
    %c0_29 = arith.constant 0 : index
    %c0_30 = arith.constant 0 : index
    %76 = vector.load %arg9[%c0_28, %c0_29, %c0_30] : memref<5x128x200xf32, #tpu.memory_space<vmem>>, vector<1x128x200xf32>
    %77 = vector.shape_cast %76 : vector<1x128x200xf32> to vector<128x200xf32>
    %cst_31 = arith.constant dense<0.000000e+00> : vector<2x200xf32>
    %78 = tpu.matmul %75, %77, %cst_31 {dimension_numbers = #tpu.dot_dimension_numbers<[1], [0], [0], [1], [0, 0, 1, 1], [], []>} : vector<2x128xf32>, vector<128x200xf32>, vector<2x200xf32> -> vector<2x200xf32>
    %79 = vector.broadcast %74 : vector<1x200xf32> to vector<2x200xf32>
    %80 = arith.addf %79, %78 : vector<2x200xf32>
    %81 = vector.extract_strided_slice %73 {offsets = [2, 0], sizes = [2, 128], strides = [1, 1]} : vector<10x128xf32> to vector<2x128xf32>
    %c1_32 = arith.constant 1 : index
    %c0_33 = arith.constant 0 : index
    %c0_34 = arith.constant 0 : index
    %82 = vector.load %arg9[%c1_32, %c0_33, %c0_34] : memref<5x128x200xf32, #tpu.memory_space<vmem>>, vector<1x128x200xf32>
    %83 = vector.shape_cast %82 : vector<1x128x200xf32> to vector<128x200xf32>
    %cst_35 = arith.constant dense<0.000000e+00> : vector<2x200xf32>
    %84 = tpu.matmul %81, %83, %cst_35 {dimension_numbers = #tpu.dot_dimension_numbers<[1], [0], [0], [1], [0, 0, 1, 1], [], []>} : vector<2x128xf32>, vector<128x200xf32>, vector<2x200xf32> -> vector<2x200xf32>
    %85 = arith.addf %80, %84 : vector<2x200xf32>
    %86 = vector.extract_strided_slice %73 {offsets = [4, 0], sizes = [2, 128], strides = [1, 1]} : vector<10x128xf32> to vector<2x128xf32>
    %c2 = arith.constant 2 : index
    %c0_36 = arith.constant 0 : index
    %c0_37 = arith.constant 0 : index
    %87 = vector.load %arg9[%c2, %c0_36, %c0_37] : memref<5x128x200xf32, #tpu.memory_space<vmem>>, vector<1x128x200xf32>
    %88 = vector.shape_cast %87 : vector<1x128x200xf32> to vector<128x200xf32>
    %cst_38 = arith.constant dense<0.000000e+00> : vector<2x200xf32>
    %89 = tpu.matmul %86, %88, %cst_38 {dimension_numbers = #tpu.dot_dimension_numbers<[1], [0], [0], [1], [0, 0, 1, 1], [], []>} : vector<2x128xf32>, vector<128x200xf32>, vector<2x200xf32> -> vector<2x200xf32>
    %90 = arith.addf %85, %89 : vector<2x200xf32>
    %91 = vector.extract_strided_slice %73 {offsets = [6, 0], sizes = [2, 128], strides = [1, 1]} : vector<10x128xf32> to vector<2x128xf32>
    %c3 = arith.constant 3 : index
    %c0_39 = arith.constant 0 : index
    %c0_40 = arith.constant 0 : index
    %92 = vector.load %arg9[%c3, %c0_39, %c0_40] : memref<5x128x200xf32, #tpu.memory_space<vmem>>, vector<1x128x200xf32>
    %93 = vector.shape_cast %92 : vector<1x128x200xf32> to vector<128x200xf32>
    %cst_41 = arith.constant dense<0.000000e+00> : vector<2x200xf32>
    %94 = tpu.matmul %91, %93, %cst_41 {dimension_numbers = #tpu.dot_dimension_numbers<[1], [0], [0], [1], [0, 0, 1, 1], [], []>} : vector<2x128xf32>, vector<128x200xf32>, vector<2x200xf32> -> vector<2x200xf32>
    %95 = arith.addf %90, %94 : vector<2x200xf32>
    %96 = vector.extract_strided_slice %73 {offsets = [8, 0], sizes = [2, 128], strides = [1, 1]} : vector<10x128xf32> to vector<2x128xf32>
    %c4 = arith.constant 4 : index
    %c0_42 = arith.constant 0 : index
    %c0_43 = arith.constant 0 : index
    %97 = vector.load %arg9[%c4, %c0_42, %c0_43] : memref<5x128x200xf32, #tpu.memory_space<vmem>>, vector<1x128x200xf32>
    %98 = vector.shape_cast %97 : vector<1x128x200xf32> to vector<128x200xf32>
    %cst_44 = arith.constant dense<0.000000e+00> : vector<2x200xf32>
    %99 = tpu.matmul %96, %98, %cst_44 {dimension_numbers = #tpu.dot_dimension_numbers<[1], [0], [0], [1], [0, 0, 1, 1], [], []>} : vector<2x128xf32>, vector<128x200xf32>, vector<2x200xf32> -> vector<2x200xf32>
    %100 = arith.addf %95, %99 : vector<2x200xf32>
    %cst_45 = arith.constant 0.000000e+00 : f32
    %101 = vector.broadcast %cst_45 : f32 to vector<2x200xf32>
    %102 = arith.maximumf %100, %101 : vector<2x200xf32>
    %c0_46 = arith.constant 0 : index
    %c0_47 = arith.constant 0 : index
    %103 = vector.load %arg11[%c0_46, %c0_47] : memref<200x128xf32, #tpu.memory_space<vmem>>, vector<200x128xf32>
    %cst_48 = arith.constant dense<0.000000e+00> : vector<2x128xf32>
    %104 = tpu.matmul %102, %103, %cst_48 {dimension_numbers = #tpu.dot_dimension_numbers<[1], [0], [0], [1], [0, 0, 1, 1], [], []>} : vector<2x200xf32>, vector<200x128xf32>, vector<2x128xf32> -> vector<2x128xf32>
    %c0_49 = arith.constant 0 : index
    %c0_50 = arith.constant 0 : index
    %105 = vector.load %arg12[%c0_49, %c0_50] : memref<1x128xf32, #tpu.memory_space<vmem>>, vector<1x128xf32>
    %106 = vector.broadcast %105 : vector<1x128xf32> to vector<2x128xf32>
    %107 = arith.addf %104, %106 : vector<2x128xf32>
    %108 = tpu.iota {dimensions = array<i32: 1>} : vector<2x128xi32>
    %c10_i32 = arith.constant 10 : i32
    %109 = vector.broadcast %c10_i32 : i32 to vector<2x128xi32>
    %110 = arith.cmpi slt, %108, %109 : vector<2x128xi32>
    %cst_51 = arith.constant -1.000000e+30 : f32
    %111 = vector.broadcast %cst_51 : f32 to vector<2x128xf32>
    %112 = arith.select %110, %107, %111 : vector<2x128xi1>, vector<2x128xf32>
    %cst_52 = arith.constant dense<0xFF800000> : vector<2xf32>
    %113 = vector.multi_reduction <maximumf>, %112, %cst_52 [1] : vector<2x128xf32> to vector<2xf32>
    %114 = vector.shape_cast %113 : vector<2xf32> to vector<2x1xf32>
    %115 = vector.broadcast %114 : vector<2x1xf32> to vector<2x128xf32>
    %116 = arith.subf %112, %115 : vector<2x128xf32>
    %117 = math.exp %116 : vector<2x128xf32>
    %cst_53 = arith.constant dense<0.000000e+00> : vector<2xf32>
    %118 = vector.multi_reduction <add>, %117, %cst_53 [1] : vector<2x128xf32> to vector<2xf32>
    %119 = vector.shape_cast %118 : vector<2xf32> to vector<2x1xf32>
    %120 = math.log %119 : vector<2x1xf32>
    %121 = vector.broadcast %120 : vector<2x1xf32> to vector<2x128xf32>
    %122 = arith.subf %116, %121 : vector<2x128xf32>
    %c0_54 = arith.constant 0 : index
    %c0_55 = arith.constant 0 : index
    %c0_56 = arith.constant 0 : index
    %123 = vector.load %arg13[%c0_54, %c0_55, %c0_56] : memref<1x2x128xf32, #tpu.memory_space<vmem>>, vector<1x2x128xf32>
    %124 = vector.shape_cast %123 : vector<1x2x128xf32> to vector<2x128xf32>
    %125 = vector.shape_cast %122 : vector<2x128xf32> to vector<1x2x128xf32>
    tpu.vector_store %arg13[%c0_54, %c0_55, %c0_56], %125 {strides = array<i32>} : memref<1x2x128xf32, #tpu.memory_space<vmem>>, vector<1x2x128xf32>,
    return
  }
  func.func @transform_0(%arg0: i32) -> (i32, i32, i32) {
    %c0_i32 = arith.constant 0 : i32
    %c0_i32_0 = arith.constant 0 : i32
    %c0_i32_1 = arith.constant 0 : i32
    return %arg0, %c0_i32, %c0_i32_0 : i32, i32, i32
  }
  func.func @transform_1(%arg0: i32) -> (i32, i32) {
    %c0_i32 = arith.constant 0 : i32
    %c0_i32_0 = arith.constant 0 : i32
    %c0_i32_1 = arith.constant 0 : i32
    return %c0_i32, %c0_i32_0 : i32, i32
  }
  func.func @transform_2(%arg0: i32) -> (i32, i32) {
    %c0_i32 = arith.constant 0 : i32
    %c0_i32_0 = arith.constant 0 : i32
    %c0_i32_1 = arith.constant 0 : i32
    return %c0_i32, %c0_i32_0 : i32, i32
  }
  func.func @transform_3(%arg0: i32) -> (i32, i32) {
    %c0_i32 = arith.constant 0 : i32
    %c0_i32_0 = arith.constant 0 : i32
    %c0_i32_1 = arith.constant 0 : i32
    return %c0_i32, %c0_i32_0 : i32, i32
  }
  func.func @transform_4(%arg0: i32) -> (i32, i32) {
    %c0_i32 = arith.constant 0 : i32
    %c0_i32_0 = arith.constant 0 : i32
    %c0_i32_1 = arith.constant 0 : i32
    return %c0_i32, %c0_i32_0 : i32, i32
  }
  func.func @transform_5(%arg0: i32) -> (i32, i32) {
    %c0_i32 = arith.constant 0 : i32
    %c0_i32_0 = arith.constant 0 : i32
    %c0_i32_1 = arith.constant 0 : i32
    return %c0_i32, %c0_i32_0 : i32, i32
  }
  func.func @transform_6(%arg0: i32) -> (i32, i32) {
    %c0_i32 = arith.constant 0 : i32
    %c0_i32_0 = arith.constant 0 : i32
    %c0_i32_1 = arith.constant 0 : i32
    return %c0_i32, %c0_i32_0 : i32, i32
  }
  func.func @transform_7(%arg0: i32) -> (i32, i32) {
    %c0_i32 = arith.constant 0 : i32
    %c0_i32_0 = arith.constant 0 : i32
    %c0_i32_1 = arith.constant 0 : i32
    return %c0_i32, %c0_i32_0 : i32, i32
  }
  func.func @transform_8(%arg0: i32) -> (i32, i32, i32) {
    %c0_i32 = arith.constant 0 : i32
    %c0_i32_0 = arith.constant 0 : i32
    %c0_i32_1 = arith.constant 0 : i32
    %c0_i32_2 = arith.constant 0 : i32
    return %c0_i32, %c0_i32_0, %c0_i32_1 : i32, i32, i32
  }
  func.func @transform_9(%arg0: i32) -> (i32, i32) {
    %c0_i32 = arith.constant 0 : i32
    %c0_i32_0 = arith.constant 0 : i32
    %c0_i32_1 = arith.constant 0 : i32
    return %c0_i32, %c0_i32_0 : i32, i32
  }
  func.func @transform_10(%arg0: i32) -> (i32, i32) {
    %c0_i32 = arith.constant 0 : i32
    %c0_i32_0 = arith.constant 0 : i32
    %c0_i32_1 = arith.constant 0 : i32
    return %c0_i32, %c0_i32_0 : i32, i32
  }
  func.func @transform_11(%arg0: i32) -> (i32, i32) {
    %c0_i32 = arith.constant 0 : i32
    %c0_i32_0 = arith.constant 0 : i32
    %c0_i32_1 = arith.constant 0 : i32
    return %c0_i32, %c0_i32_0 : i32, i32
  }
  func.func @transform_12(%arg0: i32) -> (i32, i32, i32) {
    %c0_i32 = arith.constant 0 : i32
    %c0_i32_0 = arith.constant 0 : i32
    %c0_i32_1 = arith.constant 0 : i32
    return %arg0, %c0_i32, %c0_i32_0 : i32, i32, i32
  }
}

</mosaic_0001>

<llo_original>
// kernel: lenet_forward.1
$region0: #{lenet_forward.1}
  #allocation0 [shape = 'u32[]', space=smem, size = 0x4, offset = 0x4, fixed_abs, tag = 'smem constant byte address 0x4 - core index']
  #allocation1 [shape = 'u32[144,128]{1,0:T(1,128)}', space=vmem, size = 0x12000, scoped, tag = 'internal scratch']
  %s0 = inlined_call_operand.vmem [shape: f32[1,56,84], index: 0, kind: input, shape index: {}]
  %s1 = inlined_call_operand.vmem [shape: f32[84,1280], index: 1, kind: input, shape index: {}]
  %s2 = inlined_call_operand.vmem [shape: f32[1,128], index: 2, kind: input, shape index: {}]
  %s3 = inlined_call_operand.vmem [shape: f32[128,640], index: 3, kind: input, shape index: {}]
  %s4 = inlined_call_operand.vmem [shape: f32[1,128], index: 4, kind: input, shape index: {}]
  %s5 = inlined_call_operand.vmem [shape: f32[24,56], index: 5, kind: input, shape index: {}]
  %s6 = inlined_call_operand.vmem [shape: f32[10,24], index: 6, kind: input, shape index: {}]
  %s7 = inlined_call_operand.vmem [shape: f32[24,2], index: 7, kind: input, shape index: {}]
  %s8 = inlined_call_operand.vmem [shape: f32[5,128,200], index: 8, kind: input, shape index: {}]
  %s9 = inlined_call_operand.vmem [shape: f32[1,200], index: 9, kind: input, shape index: {}]
  %s10 = inlined_call_operand.vmem [shape: f32[200,128], index: 10, kind: input, shape index: {}]
  %s11 = inlined_call_operand.vmem [shape: f32[1,128], index: 11, kind: input, shape index: {}]
  %s12 = inlined_call_operand.hbm [shape: f32[1,2,128], index: 12, kind: output, shape index: {}]
  %s13 = sld [smem:[#allocation0]]
  $region58: #{lenet_forward.1} parent=0
    _
  %s15 = ssub.s32 1, %s13
  %s16 = scalar_select 0, %s15, %s13
  $region1: #{lenet_forward.1} parent=0
    #allocation2 [shape = 'u8[1024]{0}', space=vmem, size = 0x400, scoped, tag = 'output window, operand 0, single buffered']
    #allocation3 [shape = 's32[1]{0}', space=sflag, size = 0x4, scoped, tag = 'scoped memory for lenet_forward.1']
    %17 = vsyncpa [#allocation3], 0
    // Predicated region
    $region2: #{lenet_forward.1} parent=1 // pred_check
      _
    $region3: #{lenet_forward.1} parent=1 // pred_check_branch
      %19 = sbr.rel (0) target = $region5
    $region4: #{lenet_forward.1} parent=1 // pred_region
      _
    $region5: #{lenet_forward.1} parent=1 // pred_fallthru
      _
    // Predicated region
    $region6: #{lenet_forward.1} parent=1 // pred_check
      _
    $region7: #{lenet_forward.1} parent=1 // pred_check_branch
      %21 = sbr.rel (0) target = $region9
    $region8: #{lenet_forward.1} parent=1 // pred_region
      _
    $region9: #{lenet_forward.1} parent=1 // pred_fallthru
      _
    // Predicated region
    $region10: #{lenet_forward.1} parent=1 // pred_check
      _
    $region11: #{lenet_forward.1} parent=1 // pred_check_branch
      %23 = sbr.rel (0) target = $region13
    $region12: #{lenet_forward.1} parent=1 // pred_region
      _
    $region13: #{lenet_forward.1} parent=1 // pred_fallthru
      _
    // Predicated region
    $region14: #{lenet_forward.1} parent=1 // pred_check
      _
    $region15: #{lenet_forward.1} parent=1 // pred_check_branch
      %25 = sbr.rel (0) target = $region17
    $region16: #{lenet_forward.1} parent=1 // pred_region
      _
    $region17: #{lenet_forward.1} parent=1 // pred_fallthru
      _
    // Predicated region
    $region18: #{lenet_forward.1} parent=1 // pred_check
      _
    $region19: #{lenet_forward.1} parent=1 // pred_check_branch
      %27 = sbr.rel (0) target = $region21
    $region20: #{lenet_forward.1} parent=1 // pred_region
      _
    $region21: #{lenet_forward.1} parent=1 // pred_fallthru
      _
    // Predicated region
    $region22: #{lenet_forward.1} parent=1 // pred_check
      _
    $region23: #{lenet_forward.1} parent=1 // pred_check_branch
      %29 = sbr.rel (0) target = $region25
    $region24: #{lenet_forward.1} parent=1 // pred_region
      _
    $region25: #{lenet_forward.1} parent=1 // pred_fallthru
      _
    // Predicated region
    $region26: #{lenet_forward.1} parent=1 // pred_check
      _
    $region27: #{lenet_forward.1} parent=1 // pred_check_branch
      %31 = sbr.rel (0) target = $region29
    $region28: #{lenet_forward.1} parent=1 // pred_region
      _
    $region29: #{lenet_forward.1} parent=1 // pred_fallthru
      _
    // Predicated region
    $region30: #{lenet_forward.1} parent=1 // pred_check
      _
    $region31: #{lenet_forward.1} parent=1 // pred_check_branch
      %33 = sbr.rel (0) target = $region33
    $region32: #{lenet_forward.1} parent=1 // pred_region
      _
    $region33: #{lenet_forward.1} parent=1 // pred_fallthru
      _
    // Predicated region
    $region34: #{lenet_forward.1} parent=1 // pred_check
      _
    $region35: #{lenet_forward.1} parent=1 // pred_check_branch
      %35 = sbr.rel (0) target = $region37
    $region36: #{lenet_forward.1} parent=1 // pred_region
      _
    $region37: #{lenet_forward.1} parent=1 // pred_fallthru
      _
    // Predicated region
    $region38: #{lenet_forward.1} parent=1 // pred_check
      _
    $region39: #{lenet_forward.1} parent=1 // pred_check_branch
      %37 = sbr.rel (0) target = $region41
    $region40: #{lenet_forward.1} parent=1 // pred_region
      _
    $region41: #{lenet_forward.1} parent=1 // pred_fallthru
      _
    // Predicated region
    $region42: #{lenet_forward.1} parent=1 // pred_check
      _
    $region43: #{lenet_forward.1} parent=1 // pred_check_branch
      %39 = sbr.rel (0) target = $region45
    $region44: #{lenet_forward.1} parent=1 // pred_region
      _
    $region45: #{lenet_forward.1} parent=1 // pred_fallthru
      _
    // Predicated region
    $region46: #{lenet_forward.1} parent=1 // pred_check
      _
    $region47: #{lenet_forward.1} parent=1 // pred_check_branch
      %41 = sbr.rel (0) target = $region49
    $region48: #{lenet_forward.1} parent=1 // pred_region
      _
    $region49: #{lenet_forward.1} parent=1 // pred_fallthru
      _
    %v42 = vld [vmem:[%s0] sm:$0xff]
    %v43 = vld [vmem:[%s0 + $0x8] sm:$0xff]
    %v44 = vld [vmem:[%s0 + $0x10] sm:$0xff]
    %v45 = vld [vmem:[%s0 + $0x18] sm:$0xff]
    %v46 = vld [vmem:[%s0 + $0x20] sm:$0xff]
    %v47 = vld [vmem:[%s0 + $0x28] sm:$0xff]
    %v48 = vld [vmem:[%s0 + $0x30] sm:$0xff]
    %v49 = vld [vmem:[%s1] sm:$0xff]
    %v50 = vld [vmem:[%s1 + $0x8] sm:$0xff]
    %v51 = vld [vmem:[%s1 + $0x10] sm:$0xff]
    %v52 = vld [vmem:[%s1 + $0x18] sm:$0xff]
    %v53 = vld [vmem:[%s1 + $0x20] sm:$0xff]
    %v54 = vld [vmem:[%s1 + $0x28] sm:$0xff]
    %v55 = vld [vmem:[%s1 + $0x30] sm:$0xff]
    %v56 = vld [vmem:[%s1 + $0x38] sm:$0xff]
    %v57 = vld [vmem:[%s1 + $0x40] sm:$0xff]
    %v58 = vld [vmem:[%s1 + $0x48] sm:$0xff]
    %v59 = vld [vmem:[%s1 + $0x50] sm:$0xff]
    %v60 = vld [vmem:[%s1 + $0x58] sm:$0xff]
    %v61 = vld [vmem:[%s1 + $0x60] sm:$0xff]
    %v62 = vld [vmem:[%s1 + $0x68] sm:$0xff]
    %v63 = vld [vmem:[%s1 + $0x70] sm:$0xff]
    %v64 = vld [vmem:[%s1 + $0x78] sm:$0xff]
    %v65 = vld [vmem:[%s1 + $0x80] sm:$0xff]
    %v66 = vld [vmem:[%s1 + $0x88] sm:$0xff]
    %v67 = vld [vmem:[%s1 + $0x90] sm:$0xff]
    %v68 = vld [vmem:[%s1 + $0x98] sm:$0xff]
    %v69 = vld [vmem:[%s1 + $0xa0] sm:$0xff]
    %v70 = vld [vmem:[%s1 + $0xa8] sm:$0xff]
    %v71 = vld [vmem:[%s1 + $0xb0] sm:$0xff]
    %v72 = vld [vmem:[%s1 + $0xb8] sm:$0xff]
    %v73 = vld [vmem:[%s1 + $0xc0] sm:$0xff]
    %v74 = vld [vmem:[%s1 + $0xc8] sm:$0xff]
    %v75 = vld [vmem:[%s1 + $0xd0] sm:$0xff]
    %v76 = vld [vmem:[%s1 + $0xd8] sm:$0xff]
    %v77 = vld [vmem:[%s1 + $0xe0] sm:$0xff]
    %v78 = vld [vmem:[%s1 + $0xe8] sm:$0xff]
    %v79 = vld [vmem:[%s1 + $0xf0] sm:$0xff]
    %v80 = vld [vmem:[%s1 + $0xf8] sm:$0xff]
    %v81 = vld [vmem:[%s1 + $0x100] sm:$0xff]
    %v82 = vld [vmem:[%s1 + $0x108] sm:$0xff]
    %v83 = vld [vmem:[%s1 + $0x110] sm:$0xff]
    %v84 = vld [vmem:[%s1 + $0x118] sm:$0xff]
    %v85 = vld [vmem:[%s1 + $0x120] sm:$0xff]
    %v86 = vld [vmem:[%s1 + $0x128] sm:$0xff]
    %v87 = vld [vmem:[%s1 + $0x130] sm:$0xff]
    %v88 = vld [vmem:[%s1 + $0x138] sm:$0xff]
    %v89 = vld [vmem:[%s1 + $0x140] sm:$0xff]
    %v90 = vld [vmem:[%s1 + $0x148] sm:$0xff]
    %v91 = vld [vmem:[%s1 + $0x150] sm:$0xff]
    %v92 = vld [vmem:[%s1 + $0x158] sm:$0xff]
    %v93 = vld [vmem:[%s1 + $0x160] sm:$0xff]
    %v94 = vld [vmem:[%s1 + $0x168] sm:$0xff]
    %v95 = vld [vmem:[%s1 + $0x170] sm:$0xff]
    %v96 = vld [vmem:[%s1 + $0x178] sm:$0xff]
    %v97 = vld [vmem:[%s1 + $0x180] sm:$0xff]
    %v98 = vld [vmem:[%s1 + $0x188] sm:$0xff]
    %v99 = vld [vmem:[%s1 + $0x190] sm:$0xff]
    %v100 = vld [vmem:[%s1 + $0x198] sm:$0xff]
    %v101 = vld [vmem:[%s1 + $0x1a0] sm:$0xff]
    %v102 = vld [vmem:[%s1 + $0x1a8] sm:$0xff]
    %v103 = vld [vmem:[%s1 + $0x1b0] sm:$0xff]
    %v104 = vld [vmem:[%s1 + $0x1b8] sm:$0xff]
    %v105 = vld [vmem:[%s1 + $0x1c0] sm:$0xff]
    %v106 = vld [vmem:[%s1 + $0x1c8] sm:$0xff]
    %v107 = vld [vmem:[%s1 + $0x1d0] sm:$0xff]
    %v108 = vld [vmem:[%s1 + $0x1d8] sm:$0xff]
    %v109 = vld [vmem:[%s1 + $0x1e0] sm:$0xff]
    %v110 = vld [vmem:[%s1 + $0x1e8] sm:$0xff]
    %v111 = vld [vmem:[%s1 + $0x1f0] sm:$0xff]
    %v112 = vld [vmem:[%s1 + $0x1f8] sm:$0xff]
    %v113 = vld [vmem:[%s1 + $0x200] sm:$0xff]
    %v114 = vld [vmem:[%s1 + $0x208] sm:$0xff]
    %v115 = vld [vmem:[%s1 + $0x210] sm:$0xff]
    %v116 = vld [vmem:[%s1 + $0x218] sm:$0xff]
    %v117 = vld [vmem:[%s1 + $0x220] sm:$0xff]
    %v118 = vld [vmem:[%s1 + $0x228] sm:$0xff]
    %v119 = vld [vmem:[%s1 + $0x230] sm:$0xff]
    %v120 = vld [vmem:[%s1 + $0x238] sm:$0xff]
    %v121 = vld [vmem:[%s1 + $0x240] sm:$0xff]
    %v122 = vld [vmem:[%s1 + $0x248] sm:$0xff]
    %v123 = vld [vmem:[%s1 + $0x250] sm:$0xff]
    %v124 = vld [vmem:[%s1 + $0x258] sm:$0xff]
    %v125 = vld [vmem:[%s1 + $0x260] sm:$0xff]
    %v126 = vld [vmem:[%s1 + $0x268] sm:$0xff]
    %v127 = vld [vmem:[%s1 + $0x270] sm:$0xff]
    %v128 = vld [vmem:[%s1 + $0x278] sm:$0xff]
    %v129 = vld [vmem:[%s1 + $0x280] sm:$0xff]
    %v130 = vld [vmem:[%s1 + $0x288] sm:$0xff]
    %v131 = vld [vmem:[%s1 + $0x290] sm:$0xff]
    %v132 = vld [vmem:[%s1 + $0x298] sm:$0xff]
    %v133 = vld [vmem:[%s1 + $0x2a0] sm:$0xff]
    %v134 = vld [vmem:[%s1 + $0x2a8] sm:$0xff]
    %v135 = vld [vmem:[%s1 + $0x2b0] sm:$0xff]
    %v136 = vld [vmem:[%s1 + $0x2b8] sm:$0xff]
    %v137 = vld [vmem:[%s1 + $0x2c0] sm:$0xff]
    %v138 = vld [vmem:[%s1 + $0x2c8] sm:$0xff]
    %v139 = vld [vmem:[%s1 + $0x2d0] sm:$0xff]
    %v140 = vld [vmem:[%s1 + $0x2d8] sm:$0xff]
    %v141 = vld [vmem:[%s1 + $0x2e0] sm:$0xff]
    %v142 = vld [vmem:[%s1 + $0x2e8] sm:$0xff]
    %v143 = vld [vmem:[%s1 + $0x2f0] sm:$0xff]
    %v144 = vld [vmem:[%s1 + $0x2f8] sm:$0xff]
    %v145 = vld [vmem:[%s1 + $0x300] sm:$0xff]
    %v146 = vld [vmem:[%s1 + $0x308] sm:$0xff]
    %v147 = vld [vmem:[%s1 + $0x310] sm:$0xff]
    %v148 = vld [vmem:[%s1 + $0x318] sm:$0xff]
    %v149 = vld [vmem:[%s1 + $0x320] sm:$0xf]
    %v150 = vld [vmem:[%s1 + $0x328] sm:$0xf]
    %v151 = vld [vmem:[%s1 + $0x330] sm:$0xf]
    %v152 = vld [vmem:[%s1 + $0x338] sm:$0xf]
    %v153 = vld [vmem:[%s1 + $0x340] sm:$0xf]
    %v154 = vld [vmem:[%s1 + $0x348] sm:$0xf]
    %v155 = vld [vmem:[%s1 + $0x350] sm:$0xf]
    %v156 = vld [vmem:[%s1 + $0x358] sm:$0xf]
    %v157 = vld [vmem:[%s1 + $0x360] sm:$0xf]
    %v158 = vld [vmem:[%s1 + $0x368] sm:$0xf]
    %vm159 = vcmask 687104
    %v161 = vsel %vm159, %v42, 0
    %v164 = vsel %vm159, %v43, 0
    %v167 = vsel %vm159, %v44, 0
    %v170 = vsel %vm159, %v45, 0
    %v173 = vsel %vm159, %v46, 0
    %v176 = vsel %vm159, %v47, 0
    %v179 = vsel %vm159, %v48, 0
    %vm181 = vcmask 1043456
    %v183 = vsel %vm181, %v149, 0
    %v186 = vsel %vm181, %v150, 0
    %v189 = vsel %vm181, %v151, 0
    %v192 = vsel %vm181, %v152, 0
    %v195 = vsel %vm181, %v153, 0
    %v198 = vsel %vm181, %v154, 0
    %v201 = vsel %vm181, %v155, 0
    %v204 = vsel %vm181, %v156, 0
    %v207 = vsel %vm181, %v157, 0
    %v210 = vsel %vm181, %v158, 0
    %212 = vmatprep.subr.mxu0 %v50
    %213 = vmatpush1.msra.mxu0 %v49
    %214 = vmatprep.subr.mxu0 %v60
    %215 = vmatpush1.msra.mxu0 %v59
    %216 = vmatprep.subr.mxu0 %v70
    %217 = vmatpush1.msra.mxu0 %v69
    %218 = vmatprep.subr.mxu0 %v80
    %219 = vmatpush1.msra.mxu0 %v79
    %220 = vmatprep.subr.mxu0 %v90
    %221 = vmatpush1.msra.mxu0 %v89
    %222 = vmatprep.subr.mxu0 %v100
    %223 = vmatpush1.msra.mxu0 %v99
    %224 = vmatprep.subr.mxu0 %v110
    %225 = vmatpush1.msra.mxu0 %v109
    %226 = vmatprep.subr.mxu0 %v120
    %227 = vmatpush1.msra.mxu0 %v119
    %228 = vmatprep.subr.mxu0 %v130
    %229 = vmatpush1.msra.mxu0 %v129
    %230 = vmatprep.subr.mxu0 %v140
    %231 = vmatpush1.msra.mxu0 %v139
    %232 = vmatprep.subr.mxu0 %v186
    %233 = vmatpush1.msra.mxu0 %v183
    %234 = vmatprep.subr.mxu0 0.0
    %235 = vmatpush1.msra.mxu0 0.0
    %236 = vmatprep.subr.mxu0 0.0
    %237 = vmatpush1.msra.mxu0 0.0
    %238 = vmatprep.subr.mxu0 0.0
    %239 = vmatpush1.msra.mxu0 0.0
    %240 = vmatprep.subr.mxu0 0.0
    %241 = vmatpush1.msra.mxu0 0.0
    %242 = vmatprep.subr.mxu0 0.0
    %243 = vmatpush1.msra.mxu0 0.0
    %244 = vmatprep.subr.mxu0 0.0
    %245 = vmatpush1.msra.mxu0 0.0
    %246 = vmatprep.subr.mxu0 0.0
    %247 = vmatpush1.msra.mxu0 0.0
    %248 = vmatprep.subr.mxu0 0.0
    %249 = vmatpush1.msra.mxu0 0.0
    %250 = vmatprep.subr.mxu0 0.0
    %251 = vmatpush1.msra.mxu0 0.0
    %252 = vmatprep.subr.mxu0 0.0
    %253 = vmatpush1.msra.mxu0 0.0
    %254 = vmatprep.subr.mxu0 0.0
    %255 = vmatpush1.msra.mxu0 0.0
    %256 = vmatprep.subr.mxu0 0.0
    %257 = vmatpush1.msra.mxu0 0.0
    %258 = vmatprep.subr.mxu0 0.0
    %259 = vmatpush1.msra.mxu0 0.0
    %260 = vmatprep.subr.mxu0 0.0
    %261 = vmatpush1.msra.mxu0 0.0
    %262 = vmatprep.subr.mxu0 0.0
    %263 = vmatpush1.msra.mxu0 0.0
    %264 = vmatprep.subr.mxu0 0.0
    %265 = vmatpush1.msra.mxu0 0.0
    %266 = vmatprep.subr.mxu0 0.0
    %267 = vmatpush1.msra.mxu0 0.0
    %268 = vmatprep.subr.mxu0 0.0
    %269 = vmatpush1.msra.mxu0 0.0
    %270 = vmatprep.subr.mxu0 0.0
    %271 = vmatpush1.msra.mxu0 0.0
    %272 = vmatprep.subr.mxu0 0.0
    %273 = vmatpush1.msra.mxu0 0.0
    %274 = vmatprep.subr.mxu0 0.0
    %275 = vmatpush1.msra.mxu0 0.0
    %276 = vmatprep.mubr.f32.mxu0 0.0
    %277 = vmatmul.mubr.f32.gmra.mrb[0].mxu0 %v161
    %v278 = vpop.f32.mrb[0].mxu0
    %v279 = vadd.f32 0.0, %v278
    %v280 = vpop.f32.mrb[0].mxu0
    %v281 = vadd.f32 0.0, %v280
    %282 = vmatprep.mubr.f32.mxu0 0.0
    %283 = vmatmul.mubr.f32.gmra.mrb[0].mxu0 %v164
    %v284 = vpop.f32.mrb[0].mxu0
    %v285 = vadd.f32 0.0, %v284
    %v286 = vpop.f32.mrb[0].mxu0
    %v287 = vadd.f32 0.0, %v286
    %288 = vmatprep.mubr.f32.mxu0 0.0
    %289 = vmatmul.mubr.f32.gmra.mrb[0].mxu0 %v167
    %v290 = vpop.f32.mrb[0].mxu0
    %v291 = vadd.f32 0.0, %v290
    %v292 = vpop.f32.mrb[0].mxu0
    %v293 = vadd.f32 0.0, %v292
    %294 = vmatprep.mubr.f32.mxu0 0.0
    %295 = vmatmul.mubr.f32.gmra.mrb[0].mxu0 %v170
    %v296 = vpop.f32.mrb[0].mxu0
    %v297 = vadd.f32 0.0, %v296
    %v298 = vpop.f32.mrb[0].mxu0
    %v299 = vadd.f32 0.0, %v298
    %300 = vmatprep.mubr.f32.mxu0 0.0
    %301 = vmatmul.mubr.f32.gmra.mrb[0].mxu0 %v173
    %v302 = vpop.f32.mrb[0].mxu0
    %v303 = vadd.f32 0.0, %v302
    %v304 = vpop.f32.mrb[0].mxu0
    %v305 = vadd.f32 0.0, %v304
    %306 = vmatprep.mubr.f32.mxu0 0.0
    %307 = vmatmul.mubr.f32.gmra.mrb[0].mxu0 %v176
    %v308 = vpop.f32.mrb[0].mxu0
    %v309 = vadd.f32 0.0, %v308
    %v310 = vpop.f32.mrb[0].mxu0
    %v311 = vadd.f32 0.0, %v310
    %312 = vmatprep.mubr.f32.mxu0 0.0
    %313 = vmatmul.mubr.f32.gmra.mrb[0].mxu0 %v179
    %v314 = vpop.f32.mrb[0].mxu0
    %v315 = vadd.f32 0.0, %v314
    %v316 = vpop.f32.mrb[0].mxu0
    %v317 = vadd.f32 0.0, %v316
    %318 = vdwg.mxu0
    %319 = vmatprep.subr.mxu0 %v52
    %320 = vmatpush1.msra.mxu0 %v51
    %321 = vmatprep.subr.mxu0 %v62
    %322 = vmatpush1.msra.mxu0 %v61
    %323 = vmatprep.subr.mxu0 %v72
    %324 = vmatpush1.msra.mxu0 %v71
    %325 = vmatprep.subr.mxu0 %v82
    %326 = vmatpush1.msra.mxu0 %v81
    %327 = vmatprep.subr.mxu0 %v92
    %328 = vmatpush1.msra.mxu0 %v91
    %329 = vmatprep.subr.mxu0 %v102
    %330 = vmatpush1.msra.mxu0 %v101
    %331 = vmatprep.subr.mxu0 %v112
    %332 = vmatpush1.msra.mxu0 %v111
    %333 = vmatprep.subr.mxu0 %v122
    %334 = vmatpush1.msra.mxu0 %v121
    %335 = vmatprep.subr.mxu0 %v132
    %336 = vmatpush1.msra.mxu0 %v131
    %337 = vmatprep.subr.mxu0 %v142
    %338 = vmatpush1.msra.mxu0 %v141
    %339 = vmatprep.subr.mxu0 %v192
    %340 = vmatpush1.msra.mxu0 %v189
    %341 = vmatprep.subr.mxu0 0.0
    %342 = vmatpush1.msra.mxu0 0.0
    %343 = vmatprep.subr.mxu0 0.0
    %344 = vmatpush1.msra.mxu0 0.0
    %345 = vmatprep.subr.mxu0 0.0
    %346 = vmatpush1.msra.mxu0 0.0
    %347 = vmatprep.subr.mxu0 0.0
    %348 = vmatpush1.msra.mxu0 0.0
    %349 = vmatprep.subr.mxu0 0.0
    %350 = vmatpush1.msra.mxu0 0.0
    %351 = vmatprep.subr.mxu0 0.0
    %352 = vmatpush1.msra.mxu0 0.0
    %353 = vmatprep.subr.mxu0 0.0
    %354 = vmatpush1.msra.mxu0 0.0
    %355 = vmatprep.subr.mxu0 0.0
    %356 = vmatpush1.msra.mxu0 0.0
    %357 = vmatprep.subr.mxu0 0.0
    %358 = vmatpush1.msra.mxu0 0.0
    %359 = vmatprep.subr.mxu0 0.0
    %360 = vmatpush1.msra.mxu0 0.0
    %361 = vmatprep.subr.mxu0 0.0
    %362 = vmatpush1.msra.mxu0 0.0
    %363 = vmatprep.subr.mxu0 0.0
    %364 = vmatpush1.msra.mxu0 0.0
    %365 = vmatprep.subr.mxu0 0.0
    %366 = vmatpush1.msra.mxu0 0.0
    %367 = vmatprep.subr.mxu0 0.0
    %368 = vmatpush1.msra.mxu0 0.0
    %369 = vmatprep.subr.mxu0 0.0
    %370 = vmatpush1.msra.mxu0 0.0
    %371 = vmatprep.subr.mxu0 0.0
    %372 = vmatpush1.msra.mxu0 0.0
    %373 = vmatprep.subr.mxu0 0.0
    %374 = vmatpush1.msra.mxu0 0.0
    %375 = vmatprep.subr.mxu0 0.0
    %376 = vmatpush1.msra.mxu0 0.0
    %377 = vmatprep.subr.mxu0 0.0
    %378 = vmatpush1.msra.mxu0 0.0
    %379 = vmatprep.subr.mxu0 0.0
    %380 = vmatpush1.msra.mxu0 0.0
    %381 = vmatprep.subr.mxu0 0.0
    %382 = vmatpush1.msra.mxu0 0.0
    %383 = vmatprep.mubr.f32.mxu0 0.0
    %384 = vmatmul.mubr.f32.gmra.mrb[0].mxu0 %v161
    %v385 = vpop.f32.mrb[0].mxu0
    %v386 = vadd.f32 0.0, %v385
    %v387 = vpop.f32.mrb[0].mxu0
    %v388 = vadd.f32 0.0, %v387
    %389 = vmatprep.mubr.f32.mxu0 0.0
    %390 = vmatmul.mubr.f32.gmra.mrb[0].mxu0 %v164
    %v391 = vpop.f32.mrb[0].mxu0
    %v392 = vadd.f32 0.0, %v391
    %v393 = vpop.f32.mrb[0].mxu0
    %v394 = vadd.f32 0.0, %v393
    %395 = vmatprep.mubr.f32.mxu0 0.0
    %396 = vmatmul.mubr.f32.gmra.mrb[0].mxu0 %v167
    %v397 = vpop.f32.mrb[0].mxu0
    %v398 = vadd.f32 0.0, %v397
    %v399 = vpop.f32.mrb[0].mxu0
    %v400 = vadd.f32 0.0, %v399
    %401 = vmatprep.mubr.f32.mxu0 0.0
    %402 = vmatmul.mubr.f32.gmra.mrb[0].mxu0 %v170
    %v403 = vpop.f32.mrb[0].mxu0
    %v404 = vadd.f32 0.0, %v403
    %v405 = vpop.f32.mrb[0].mxu0
    %v406 = vadd.f32 0.0, %v405
    %407 = vmatprep.mubr.f32.mxu0 0.0
    %408 = vmatmul.mubr.f32.gmra.mrb[0].mxu0 %v173
    %v409 = vpop.f32.mrb[0].mxu0
    %v410 = vadd.f32 0.0, %v409
    %v411 = vpop.f32.mrb[0].mxu0
    %v412 = vadd.f32 0.0, %v411
    %413 = vmatprep.mubr.f32.mxu0 0.0
    %414 = vmatmul.mubr.f32.gmra.mrb[0].mxu0 %v176
    %v415 = vpop.f32.mrb[0].mxu0
    %v416 = vadd.f32 0.0, %v415
    %v417 = vpop.f32.mrb[0].mxu0
    %v418 = vadd.f32 0.0, %v417
    %419 = vmatprep.mubr.f32.mxu0 0.0
    %420 = vmatmul.mubr.f32.gmra.mrb[0].mxu0 %v179
    %v421 = vpop.f32.mrb[0].mxu0
    %v422 = vadd.f32 0.0, %v421
    %v423 = vpop.f32.mrb[0].mxu0
    %v424 = vadd.f32 0.0, %v423
    %425 = vdwg.mxu0
    %426 = vmatprep.subr.mxu0 %v54
    %427 = vmatpush1.msra.mxu0 %v53
    %428 = vmatprep.subr.mxu0 %v64
    %429 = vmatpush1.msra.mxu0 %v63
    %430 = vmatprep.subr.mxu0 %v74
    %431 = vmatpush1.msra.mxu0 %v73
    %432 = vmatprep.subr.mxu0 %v84
    %433 = vmatpush1.msra.mxu0 %v83
    %434 = vmatprep.subr.mxu0 %v94
    %435 = vmatpush1.msra.mxu0 %v93
    %436 = vmatprep.subr.mxu0 %v104
    %437 = vmatpush1.msra.mxu0 %v103
    %438 = vmatprep.subr.mxu0 %v114
    %439 = vmatpush1.msra.mxu0 %v113
    %440 = vmatprep.subr.mxu0 %v124
    %441 = vmatpush1.msra.mxu0 %v123
    %442 = vmatprep.subr.mxu0 %v134
    %443 = vmatpush1.msra.mxu0 %v133
    %444 = vmatprep.subr.mxu0 %v144
    %445 = vmatpush1.msra.mxu0 %v143
    %446 = vmatprep.subr.mxu0 %v198
    %447 = vmatpush1.msra.mxu0 %v195
    %448 = vmatprep.subr.mxu0 0.0
    %449 = vmatpush1.msra.mxu0 0.0
    %450 = vmatprep.subr.mxu0 0.0
    %451 = vmatpush1.msra.mxu0 0.0
    %452 = vmatprep.subr.mxu0 0.0
    %453 = vmatpush1.msra.mxu0 0.0
    %454 = vmatprep.subr.mxu0 0.0
    %455 = vmatpush1.msra.mxu0 0.0
    %456 = vmatprep.subr.mxu0 0.0
    %457 = vmatpush1.msra.mxu0 0.0
    %458 = vmatprep.subr.mxu0 0.0
    %459 = vmatpush1.msra.mxu0 0.0
    %460 = vmatprep.subr.mxu0 0.0
    %461 = vmatpush1.msra.mxu0 0.0
    %462 = vmatprep.subr.mxu0 0.0
    %463 = vmatpush1.msra.mxu0 0.0
    %464 = vmatprep.subr.mxu0 0.0
    %465 = vmatpush1.msra.mxu0 0.0
    %466 = vmatprep.subr.mxu0 0.0
    %467 = vmatpush1.msra.mxu0 0.0
    %468 = vmatprep.subr.mxu0 0.0
    %469 = vmatpush1.msra.mxu0 0.0
    %470 = vmatprep.subr.mxu0 0.0
    %471 = vmatpush1.msra.mxu0 0.0
    %472 = vmatprep.subr.mxu0 0.0
    %473 = vmatpush1.msra.mxu0 0.0
    %474 = vmatprep.subr.mxu0 0.0
    %475 = vmatpush1.msra.mxu0 0.0
    %476 = vmatprep.subr.mxu0 0.0
    %477 = vmatpush1.msra.mxu0 0.0
    %478 = vmatprep.subr.mxu0 0.0
    %479 = vmatpush1.msra.mxu0 0.0
    %480 = vmatprep.subr.mxu0 0.0
    %481 = vmatpush1.msra.mxu0 0.0
    %482 = vmatprep.subr.mxu0 0.0
    %483 = vmatpush1.msra.mxu0 0.0
    %484 = vmatprep.subr.mxu0 0.0
    %485 = vmatpush1.msra.mxu0 0.0
    %486 = vmatprep.subr.mxu0 0.0
    %487 = vmatpush1.msra.mxu0 0.0
    %488 = vmatprep.subr.mxu0 0.0
    %489 = vmatpush1.msra.mxu0 0.0
    %490 = vmatprep.mubr.f32.mxu0 0.0
    %491 = vmatmul.mubr.f32.gmra.mrb[0].mxu0 %v161
    %v492 = vpop.f32.mrb[0].mxu0
    %v493 = vadd.f32 0.0, %v492
    %v494 = vpop.f32.mrb[0].mxu0
    %v495 = vadd.f32 0.0, %v494
    %496 = vmatprep.mubr.f32.mxu0 0.0
    %497 = vmatmul.mubr.f32.gmra.mrb[0].mxu0 %v164
    %v498 = vpop.f32.mrb[0].mxu0
    %v499 = vadd.f32 0.0, %v498
    %v500 = vpop.f32.mrb[0].mxu0
    %v501 = vadd.f32 0.0, %v500
    %502 = vmatprep.mubr.f32.mxu0 0.0
    %503 = vmatmul.mubr.f32.gmra.mrb[0].mxu0 %v167
    %v504 = vpop.f32.mrb[0].mxu0
    %v505 = vadd.f32 0.0, %v504
    %v506 = vpop.f32.mrb[0].mxu0
    %v507 = vadd.f32 0.0, %v506
    %508 = vmatprep.mubr.f32.mxu0 0.0
    %509 = vmatmul.mubr.f32.gmra.mrb[0].mxu0 %v170
    %v510 = vpop.f32.mrb[0].mxu0
    %v511 = vadd.f32 0.0, %v510
    %v512 = vpop.f32.mrb[0].mxu0
    %v513 = vadd.f32 0.0, %v512
    %514 = vmatprep.mubr.f32.mxu0 0.0
    %515 = vmatmul.mubr.f32.gmra.mrb[0].mxu0 %v173
    %v516 = vpop.f32.mrb[0].mxu0
    %v517 = vadd.f32 0.0, %v516
    %v518 = vpop.f32.mrb[0].mxu0
    %v519 = vadd.f32 0.0, %v518
    %520 = vmatprep.mubr.f32.mxu0 0.0
    %521 = vmatmul.mubr.f32.gmra.mrb[0].mxu0 %v176
    %v522 = vpop.f32.mrb[0].mxu0
    %v523 = vadd.f32 0.0, %v522
    %v524 = vpop.f32.mrb[0].mxu0
    %v525 = vadd.f32 0.0, %v524
    %526 = vmatprep.mubr.f32.mxu0 0.0
    %527 = vmatmul.mubr.f32.gmra.mrb[0].mxu0 %v179
    %v528 = vpop.f32.mrb[0].mxu0
    %v529 = vadd.f32 0.0, %v528
    %v530 = vpop.f32.mrb[0].mxu0
    %v531 = vadd.f32 0.0, %v530
    %532 = vdwg.mxu0
    %533 = vmatprep.subr.mxu0 %v56
    %534 = vmatpush1.msra.mxu0 %v55
    %535 = vmatprep.subr.mxu0 %v66
    %536 = vmatpush1.msra.mxu0 %v65
    %537 = vmatprep.subr.mxu0 %v76
    %538 = vmatpush1.msra.mxu0 %v75
    %539 = vmatprep.subr.mxu0 %v86
    %540 = vmatpush1.msra.mxu0 %v85
    %541 = vmatprep.subr.mxu0 %v96
    %542 = vmatpush1.msra.mxu0 %v95
    %543 = vmatprep.subr.mxu0 %v106
    %544 = vmatpush1.msra.mxu0 %v105
    %545 = vmatprep.subr.mxu0 %v116
    %546 = vmatpush1.msra.mxu0 %v115
    %547 = vmatprep.subr.mxu0 %v126
    %548 = vmatpush1.msra.mxu0 %v125
    %549 = vmatprep.subr.mxu0 %v136
    %550 = vmatpush1.msra.mxu0 %v135
    %551 = vmatprep.subr.mxu0 %v146
    %552 = vmatpush1.msra.mxu0 %v145
    %553 = vmatprep.subr.mxu0 %v204
    %554 = vmatpush1.msra.mxu0 %v201
    %555 = vmatprep.subr.mxu0 0.0
    %556 = vmatpush1.msra.mxu0 0.0
    %557 = vmatprep.subr.mxu0 0.0
    %558 = vmatpush1.msra.mxu0 0.0
    %559 = vmatprep.subr.mxu0 0.0
    %560 = vmatpush1.msra.mxu0 0.0
    %561 = vmatprep.subr.mxu0 0.0
    %562 = vmatpush1.msra.mxu0 0.0
    %563 = vmatprep.subr.mxu0 0.0
    %564 = vmatpush1.msra.mxu0 0.0
    %565 = vmatprep.subr.mxu0 0.0
    %566 = vmatpush1.msra.mxu0 0.0
    %567 = vmatprep.subr.mxu0 0.0
    %568 = vmatpush1.msra.mxu0 0.0
    %569 = vmatprep.subr.mxu0 0.0
    %570 = vmatpush1.msra.mxu0 0.0
    %571 = vmatprep.subr.mxu0 0.0
    %572 = vmatpush1.msra.mxu0 0.0
    %573 = vmatprep.subr.mxu0 0.0
    %574 = vmatpush1.msra.mxu0 0.0
    %575 = vmatprep.subr.mxu0 0.0
    %576 = vmatpush1.msra.mxu0 0.0
    %577 = vmatprep.subr.mxu0 0.0
    %578 = vmatpush1.msra.mxu0 0.0
    %579 = vmatprep.subr.mxu0 0.0
    %580 = vmatpush1.msra.mxu0 0.0
    %581 = vmatprep.subr.mxu0 0.0
    %582 = vmatpush1.msra.mxu0 0.0
    %583 = vmatprep.subr.mxu0 0.0
    %584 = vmatpush1.msra.mxu0 0.0
    %585 = vmatprep.subr.mxu0 0.0
    %586 = vmatpush1.msra.mxu0 0.0
    %587 = vmatprep.subr.mxu0 0.0
    %588 = vmatpush1.msra.mxu0 0.0
    %589 = vmatprep.subr.mxu0 0.0
    %590 = vmatpush1.msra.mxu0 0.0
    %591 = vmatprep.subr.mxu0 0.0
    %592 = vmatpush1.msra.mxu0 0.0
    %593 = vmatprep.subr.mxu0 0.0
    %594 = vmatpush1.msra.mxu0 0.0
    %595 = vmatprep.subr.mxu0 0.0
    %596 = vmatpush1.msra.mxu0 0.0
    %597 = vmatprep.mubr.f32.mxu0 0.0
    %598 = vmatmul.mubr.f32.gmra.mrb[0].mxu0 %v161
    %v599 = vpop.f32.mrb[0].mxu0
    %v600 = vadd.f32 0.0, %v599
    %v601 = vpop.f32.mrb[0].mxu0
    %v602 = vadd.f32 0.0, %v601
    %603 = vmatprep.mubr.f32.mxu0 0.0
    %604 = vmatmul.mubr.f32.gmra.mrb[0].mxu0 %v164
    %v605 = vpop.f32.mrb[0].mxu0
    %v606 = vadd.f32 0.0, %v605
    %v607 = vpop.f32.mrb[0].mxu0
    %v608 = vadd.f32 0.0, %v607
    %609 = vmatprep.mubr.f32.mxu0 0.0
    %610 = vmatmul.mubr.f32.gmra.mrb[0].mxu0 %v167
    %v611 = vpop.f32.mrb[0].mxu0
    %v612 = vadd.f32 0.0, %v611
    %v613 = vpop.f32.mrb[0].mxu0
    %v614 = vadd.f32 0.0, %v613
    %615 = vmatprep.mubr.f32.mxu0 0.0
    %616 = vmatmul.mubr.f32.gmra.mrb[0].mxu0 %v170
    %v617 = vpop.f32.mrb[0].mxu0
    %v618 = vadd.f32 0.0, %v617
    %v619 = vpop.f32.mrb[0].mxu0
    %v620 = vadd.f32 0.0, %v619
    %621 = vmatprep.mubr.f32.mxu0 0.0
    %622 = vmatmul.mubr.f32.gmra.mrb[0].mxu0 %v173
    %v623 = vpop.f32.mrb[0].mxu0
    %v624 = vadd.f32 0.0, %v623
    %v625 = vpop.f32.mrb[0].mxu0
    %v626 = vadd.f32 0.0, %v625
    %627 = vmatprep.mubr.f32.mxu0 0.0
    %628 = vmatmul.mubr.f32.gmra.mrb[0].mxu0 %v176
    %v629 = vpop.f32.mrb[0].mxu0
    %v630 = vadd.f32 0.0, %v629
    %v631 = vpop.f32.mrb[0].mxu0
    %v632 = vadd.f32 0.0, %v631
    %633 = vmatprep.mubr.f32.mxu0 0.0
    %634 = vmatmul.mubr.f32.gmra.mrb[0].mxu0 %v179
    %v635 = vpop.f32.mrb[0].mxu0
    %v636 = vadd.f32 0.0, %v635
    %v637 = vpop.f32.mrb[0].mxu0
    %v638 = vadd.f32 0.0, %v637
    %639 = vdwg.mxu0
    %640 = vmatprep.subr.mxu0 %v58
    %641 = vmatpush1.msra.mxu0 %v57
    %642 = vmatprep.subr.mxu0 %v68
    %643 = vmatpush1.msra.mxu0 %v67
    %644 = vmatprep.subr.mxu0 %v78
    %645 = vmatpush1.msra.mxu0 %v77
    %646 = vmatprep.subr.mxu0 %v88
    %647 = vmatpush1.msra.mxu0 %v87
    %648 = vmatprep.subr.mxu0 %v98
    %649 = vmatpush1.msra.mxu0 %v97
    %650 = vmatprep.subr.mxu0 %v108
    %651 = vmatpush1.msra.mxu0 %v107
    %652 = vmatprep.subr.mxu0 %v118
    %653 = vmatpush1.msra.mxu0 %v117
    %654 = vmatprep.subr.mxu0 %v128
    %655 = vmatpush1.msra.mxu0 %v127
    %656 = vmatprep.subr.mxu0 %v138
    %657 = vmatpush1.msra.mxu0 %v137
    %658 = vmatprep.subr.mxu0 %v148
    %659 = vmatpush1.msra.mxu0 %v147
    %660 = vmatprep.subr.mxu0 %v210
    %661 = vmatpush1.msra.mxu0 %v207
    %662 = vmatprep.subr.mxu0 0.0
    %663 = vmatpush1.msra.mxu0 0.0
    %664 = vmatprep.subr.mxu0 0.0
    %665 = vmatpush1.msra.mxu0 0.0
    %666 = vmatprep.subr.mxu0 0.0
    %667 = vmatpush1.msra.mxu0 0.0
    %668 = vmatprep.subr.mxu0 0.0
    %669 = vmatpush1.msra.mxu0 0.0
    %670 = vmatprep.subr.mxu0 0.0
    %671 = vmatpush1.msra.mxu0 0.0
    %672 = vmatprep.subr.mxu0 0.0
    %673 = vmatpush1.msra.mxu0 0.0
    %674 = vmatprep.subr.mxu0 0.0
    %675 = vmatpush1.msra.mxu0 0.0
    %676 = vmatprep.subr.mxu0 0.0
    %677 = vmatpush1.msra.mxu0 0.0
    %678 = vmatprep.subr.mxu0 0.0
    %679 = vmatpush1.msra.mxu0 0.0
    %680 = vmatprep.subr.mxu0 0.0
    %681 = vmatpush1.msra.mxu0 0.0
    %682 = vmatprep.subr.mxu0 0.0
    %683 = vmatpush1.msra.mxu0 0.0
    %684 = vmatprep.subr.mxu0 0.0
    %685 = vmatpush1.msra.mxu0 0.0
    %686 = vmatprep.subr.mxu0 0.0
    %687 = vmatpush1.msra.mxu0 0.0
    %688 = vmatprep.subr.mxu0 0.0
    %689 = vmatpush1.msra.mxu0 0.0
    %690 = vmatprep.subr.mxu0 0.0
    %691 = vmatpush1.msra.mxu0 0.0
    %692 = vmatprep.subr.mxu0 0.0
    %693 = vmatpush1.msra.mxu0 0.0
    %694 = vmatprep.subr.mxu0 0.0
    %695 = vmatpush1.msra.mxu0 0.0
    %696 = vmatprep.subr.mxu0 0.0
    %697 = vmatpush1.msra.mxu0 0.0
    %698 = vmatprep.subr.mxu0 0.0
    %699 = vmatpush1.msra.mxu0 0.0
    %700 = vmatprep.subr.mxu0 0.0
    %701 = vmatpush1.msra.mxu0 0.0
    %702 = vmatprep.subr.mxu0 0.0
    %703 = vmatpush1.msra.mxu0 0.0
    %704 = vmatprep.mubr.f32.mxu0 0.0
    %705 = vmatmul.mubr.f32.gmra.mrb[0].mxu0 %v161
    %v706 = vpop.f32.mrb[0].mxu0
    %v707 = vadd.f32 0.0, %v706
    %v708 = vpop.f32.mrb[0].mxu0
    %v709 = vadd.f32 0.0, %v708
    %710 = vmatprep.mubr.f32.mxu0 0.0
    %711 = vmatmul.mubr.f32.gmra.mrb[0].mxu0 %v164
    %v712 = vpop.f32.mrb[0].mxu0
    %v713 = vadd.f32 0.0, %v712
    %v714 = vpop.f32.mrb[0].mxu0
    %v715 = vadd.f32 0.0, %v714
    %716 = vmatprep.mubr.f32.mxu0 0.0
    %717 = vmatmul.mubr.f32.gmra.mrb[0].mxu0 %v167
    %v718 = vpop.f32.mrb[0].mxu0
    %v719 = vadd.f32 0.0, %v718
    %v720 = vpop.f32.mrb[0].mxu0
    %v721 = vadd.f32 0.0, %v720
    %722 = vmatprep.mubr.f32.mxu0 0.0
    %723 = vmatmul.mubr.f32.gmra.mrb[0].mxu0 %v170
    %v724 = vpop.f32.mrb[0].mxu0
    %v725 = vadd.f32 0.0, %v724
    %v726 = vpop.f32.mrb[0].mxu0
    %v727 = vadd.f32 0.0, %v726
    %728 = vmatprep.mubr.f32.mxu0 0.0
    %729 = vmatmul.mubr.f32.gmra.mrb[0].mxu0 %v173
    %v730 = vpop.f32.mrb[0].mxu0
    %v731 = vadd.f32 0.0, %v730
    %v732 = vpop.f32.mrb[0].mxu0
    %v733 = vadd.f32 0.0, %v732
    %734 = vmatprep.mubr.f32.mxu0 0.0
    %735 = vmatmul.mubr.f32.gmra.mrb[0].mxu0 %v176
    %v736 = vpop.f32.mrb[0].mxu0
    %v737 = vadd.f32 0.0, %v736
    %v738 = vpop.f32.mrb[0].mxu0
    %v739 = vadd.f32 0.0, %v738
    %740 = vmatprep.mubr.f32.mxu0 0.0
    %741 = vmatmul.mubr.f32.gmra.mrb[0].mxu0 %v179
    %v742 = vpop.f32.mrb[0].mxu0
    %v743 = vadd.f32 0.0, %v742
    %v744 = vpop.f32.mrb[0].mxu0
    %v745 = vadd.f32 0.0, %v744
    %746 = vdwg.mxu0
    %v747 = vrot.slane %v386, 1
    %v748 = vrot.slane %v388, 1
    %v749 = vrot.slane %v392, 1
    %v750 = vrot.slane %v394, 1
    %v751 = vrot.slane %v398, 1
    %v752 = vrot.slane %v400, 1
    %v753 = vrot.slane %v404, 1
    %v754 = vrot.slane %v406, 1
    %v755 = vrot.slane %v410, 1
    %v756 = vrot.slane %v412, 1
    %v757 = vrot.slane %v416, 1
    %v758 = vrot.slane %v418, 1
    %v759 = vrot.slane %v422, 1
    %v760 = vrot.slane %v424, 1
    %v761 = vlaneseq
    %v762 = vshrl.u32 %v761, 7
    %vm763 = vcmp.lt.s32.totalorder %v762, 7
    %v764 = vsel %vm763, %v757, %v759
    %v765 = vsel %vm763, %v758, %v760
    %v766 = vsel %vm763, %v755, %v757
    %v767 = vsel %vm763, %v756, %v758
    %v768 = vsel %vm763, %v753, %v755
    %v769 = vsel %vm763, %v754, %v756
    %v770 = vsel %vm763, %v751, %v753
    %v771 = vsel %vm763, %v752, %v754
    %v772 = vsel %vm763, %v749, %v751
    %v773 = vsel %vm763, %v750, %v752
    %v774 = vsel %vm763, %v747, %v749
    %v775 = vsel %vm763, %v748, %v750
    %v776 = vsel %vm763, %v759, %v747
    %v777 = vsel %vm763, %v760, %v748
    %v778 = vadd.f32 %v279, %v774
    %v779 = vadd.f32 %v281, %v775
    %v780 = vadd.f32 %v285, %v772
    %v781 = vadd.f32 %v287, %v773
    %v782 = vadd.f32 %v291, %v770
    %v783 = vadd.f32 %v293, %v771
    %v784 = vadd.f32 %v297, %v768
    %v785 = vadd.f32 %v299, %v769
    %v786 = vadd.f32 %v303, %v766
    %v787 = vadd.f32 %v305, %v767
    %v788 = vadd.f32 %v309, %v764
    %v789 = vadd.f32 %v311, %v765
    %v790 = vadd.f32 %v315, %v776
    %v791 = vadd.f32 %v317, %v777
    %v792 = vrot.slane %v493, 2
    %v793 = vrot.slane %v495, 2
    %v794 = vrot.slane %v499, 2
    %v795 = vrot.slane %v501, 2
    %v796 = vrot.slane %v505, 2
    %v797 = vrot.slane %v507, 2
    %v798 = vrot.slane %v511, 2
    %v799 = vrot.slane %v513, 2
    %v800 = vrot.slane %v517, 2
    %v801 = vrot.slane %v519, 2
    %v802 = vrot.slane %v523, 2
    %v803 = vrot.slane %v525, 2
    %v804 = vrot.slane %v529, 2
    %v805 = vrot.slane %v531, 2
    %vm806 = vcmp.lt.s32.totalorder %v762, 6
    %v807 = vsel %vm806, %v802, %v804
    %v808 = vsel %vm806, %v803, %v805
    %v809 = vsel %vm806, %v800, %v802
    %v810 = vsel %vm806, %v801, %v803
    %v811 = vsel %vm806, %v798, %v800
    %v812 = vsel %vm806, %v799, %v801
    %v813 = vsel %vm806, %v796, %v798
    %v814 = vsel %vm806, %v797, %v799
    %v815 = vsel %vm806, %v794, %v796
    %v816 = vsel %vm806, %v795, %v797
    %v817 = vsel %vm806, %v792, %v794
    %v818 = vsel %vm806, %v793, %v795
    %v819 = vsel %vm806, %v804, %v792
    %v820 = vsel %vm806, %v805, %v793
    %v821 = vadd.f32 %v778, %v817
    %v822 = vadd.f32 %v779, %v818
    %v823 = vadd.f32 %v780, %v815
    %v824 = vadd.f32 %v781, %v816
    %v825 = vadd.f32 %v782, %v813
    %v826 = vadd.f32 %v783, %v814
    %v827 = vadd.f32 %v784, %v811
    %v828 = vadd.f32 %v785, %v812
    %v829 = vadd.f32 %v786, %v809
    %v830 = vadd.f32 %v787, %v810
    %v831 = vadd.f32 %v788, %v807
    %v832 = vadd.f32 %v789, %v808
    %v833 = vadd.f32 %v790, %v819
    %v834 = vadd.f32 %v791, %v820
    %v835 = vrot.slane %v600, 3
    %v836 = vrot.slane %v602, 3
    %v837 = vrot.slane %v606, 3
    %v838 = vrot.slane %v608, 3
    %v839 = vrot.slane %v612, 3
    %v840 = vrot.slane %v614, 3
    %v841 = vrot.slane %v618, 3
    %v842 = vrot.slane %v620, 3
    %v843 = vrot.slane %v624, 3
    %v844 = vrot.slane %v626, 3
    %v845 = vrot.slane %v630, 3
    %v846 = vrot.slane %v632, 3
    %v847 = vrot.slane %v636, 3
    %v848 = vrot.slane %v638, 3
    %vm849 = vcmp.lt.s32.totalorder %v762, 5
    %v850 = vsel %vm849, %v845, %v847
    %v851 = vsel %vm849, %v846, %v848
    %v852 = vsel %vm849, %v843, %v845
    %v853 = vsel %vm849, %v844, %v846
    %v854 = vsel %vm849, %v841, %v843
    %v855 = vsel %vm849, %v842, %v844
    %v856 = vsel %vm849, %v839, %v841
    %v857 = vsel %vm849, %v840, %v842
    %v858 = vsel %vm849, %v837, %v839
    %v859 = vsel %vm849, %v838, %v840
    %v860 = vsel %vm849, %v835, %v837
    %v861 = vsel %vm849, %v836, %v838
    %v862 = vsel %vm849, %v847, %v835
    %v863 = vsel %vm849, %v848, %v836
    %v864 = vadd.f32 %v821, %v860
    %v865 = vadd.f32 %v822, %v861
    %v866 = vadd.f32 %v823, %v858
    %v867 = vadd.f32 %v824, %v859
    %v868 = vadd.f32 %v825, %v856
    %v869 = vadd.f32 %v826, %v857
    %v870 = vadd.f32 %v827, %v854
    %v871 = vadd.f32 %v828, %v855
    %v872 = vadd.f32 %v829, %v852
    %v873 = vadd.f32 %v830, %v853
    %v874 = vadd.f32 %v831, %v850
    %v875 = vadd.f32 %v832, %v851
    %v876 = vadd.f32 %v833, %v862
    %v877 = vadd.f32 %v834, %v863
    %v878 = vrot.slane %v707, 4
    %v879 = vrot.slane %v709, 4
    %v880 = vrot.slane %v713, 4
    %v881 = vrot.slane %v715, 4
    %v882 = vrot.slane %v719, 4
    %v883 = vrot.slane %v721, 4
    %v884 = vrot.slane %v725, 4
    %v885 = vrot.slane %v727, 4
    %v886 = vrot.slane %v731, 4
    %v887 = vrot.slane %v733, 4
    %v888 = vrot.slane %v737, 4
    %v889 = vrot.slane %v739, 4
    %v890 = vrot.slane %v743, 4
    %v891 = vrot.slane %v745, 4
    %vm892 = vcmp.lt.s32.totalorder %v762, 4
    %v893 = vsel %vm892, %v888, %v890
    %v894 = vsel %vm892, %v889, %v891
    %v895 = vsel %vm892, %v886, %v888
    %v896 = vsel %vm892, %v887, %v889
    %v897 = vsel %vm892, %v884, %v886
    %v898 = vsel %vm892, %v885, %v887
    %v899 = vsel %vm892, %v882, %v884
    %v900 = vsel %vm892, %v883, %v885
    %v901 = vsel %vm892, %v880, %v882
    %v902 = vsel %vm892, %v881, %v883
    %v903 = vsel %vm892, %v878, %v880
    %v904 = vsel %vm892, %v879, %v881
    %v905 = vsel %vm892, %v890, %v878
    %v906 = vsel %vm892, %v891, %v879
    %v907 = vadd.f32 %v864, %v903
    %v908 = vadd.f32 %v865, %v904
    %v909 = vadd.f32 %v866, %v901
    %v910 = vadd.f32 %v867, %v902
    %v911 = vadd.f32 %v868, %v899
    %v912 = vadd.f32 %v869, %v900
    %v913 = vadd.f32 %v870, %v897
    %v914 = vadd.f32 %v871, %v898
    %v915 = vadd.f32 %v872, %v895
    %v916 = vadd.f32 %v873, %v896
    %v917 = vadd.f32 %v874, %v893
    %v918 = vadd.f32 %v875, %v894
    %v919 = vadd.f32 %v876, %v905
    %v920 = vadd.f32 %v877, %v906
    %v921 = vmax.f32 %v907, %v908
    %v922 = vmax.f32 %v909, %v910
    %v923 = vmax.f32 %v911, %v912
    %v924 = vmax.f32 %v913, %v914
    %v925 = vmax.f32 %v915, %v916
    %v926 = vmax.f32 %v917, %v918
    %v927 = vmax.f32 %v919, %v920
    %v928 = vrot.slane %v921, 1
    %v929 = vrot.slane %v922, 1
    %v930 = vrot.slane %v923, 1
    %v931 = vrot.slane %v924, 1
    %v932 = vrot.slane %v925, 1
    %v933 = vrot.slane %v926, 1
    %v934 = vrot.slane %v927, 1
    %v935 = vsel %vm763, %v933, %v934
    %v936 = vsel %vm763, %v932, %v933
    %v937 = vsel %vm763, %v931, %v932
    %v938 = vsel %vm763, %v930, %v931
    %v939 = vsel %vm763, %v929, %v930
    %v940 = vsel %vm763, %v928, %v929
    %v941 = vsel %vm763, %v934, %v928
    %v942 = vmax.f32 %v921, %v940
    %v943 = vmax.f32 %v922, %v939
    %v944 = vmax.f32 %v923, %v938
    %v945 = vmax.f32 %v924, %v937
    %v946 = vmax.f32 %v925, %v936
    %v947 = vmax.f32 %v926, %v935
    %v948 = vmax.f32 %v927, %v941
    %v949 = vld [vmem:[%s5] sm:$0xff]
    %v950 = vld [vmem:[%s5 + $0x8] sm:$0xff]
    %v951 = vld [vmem:[%s5 + $0x10] sm:$0xff]
    %v952 = vld [vmem:[%s2] sm:$0x1]
    %v954 = vlaneseq
    %v955 = vshrl.u32 %v954, 7
    %v956 = vsub.s32 0, %v955
    %v957 = vrot.slane %v952, %v956
    %vm959 = vcmask 457728
    %v961 = vsel %vm959, %v949, 0
    %v964 = vsel %vm959, %v950, 0
    %v967 = vsel %vm959, %v951, 0
    %969 = vmatprep.subr.mxu0 0.0
    %970 = vmatpush1.msra.mxu0 %v942
    %971 = vmatprep.subr.mxu0 0.0
    %972 = vmatpush1.msra.mxu0 %v943
    %973 = vmatprep.subr.mxu0 0.0
    %974 = vmatpush1.msra.mxu0 %v944
    %975 = vmatprep.subr.mxu0 0.0
    %976 = vmatpush1.msra.mxu0 %v945
    %977 = vmatprep.subr.mxu0 0.0
    %978 = vmatpush1.msra.mxu0 %v946
    %979 = vmatprep.subr.mxu0 0.0
    %980 = vmatpush1.msra.mxu0 %v947
    %981 = vmatprep.subr.mxu0 0.0
    %982 = vmatpush1.msra.mxu0 %v948
    %983 = vmatprep.subr.mxu0 0.0
    %984 = vmatpush1.msra.mxu0 0.0
    %985 = vmatprep.subr.mxu0 0.0
    %986 = vmatpush1.msra.mxu0 0.0
    %987 = vmatprep.subr.mxu0 0.0
    %988 = vmatpush1.msra.mxu0 0.0
    %989 = vmatprep.subr.mxu0 0.0
    %990 = vmatpush1.msra.mxu0 0.0
    %991 = vmatprep.subr.mxu0 0.0
    %992 = vmatpush1.msra.mxu0 0.0
    %993 = vmatprep.subr.mxu0 0.0
    %994 = vmatpush1.msra.mxu0 0.0
    %995 = vmatprep.subr.mxu0 0.0
    %996 = vmatpush1.msra.mxu0 0.0
    %997 = vmatprep.subr.mxu0 0.0
    %998 = vmatpush1.msra.mxu0 0.0
    %999 = vmatprep.subr.mxu0 0.0
    %1000 = vmatpush1.msra.mxu0 0.0
    %1001 = vmatprep.subr.mxu0 0.0
    %1002 = vmatpush1.msra.mxu0 0.0
    %1003 = vmatprep.subr.mxu0 0.0
    %1004 = vmatpush1.msra.mxu0 0.0
    %1005 = vmatprep.subr.mxu0 0.0
    %1006 = vmatpush1.msra.mxu0 0.0
    %1007 = vmatprep.subr.mxu0 0.0
    %1008 = vmatpush1.msra.mxu0 0.0
    %1009 = vmatprep.subr.mxu0 0.0
    %1010 = vmatpush1.msra.mxu0 0.0
    %1011 = vmatprep.subr.mxu0 0.0
    %1012 = vmatpush1.msra.mxu0 0.0
    %1013 = vmatprep.subr.mxu0 0.0
    %1014 = vmatpush1.msra.mxu0 0.0
    %1015 = vmatprep.subr.mxu0 0.0
    %1016 = vmatpush1.msra.mxu0 0.0
    %1017 = vmatprep.subr.mxu0 0.0
    %1018 = vmatpush1.msra.mxu0 0.0
    %1019 = vmatprep.subr.mxu0 0.0
    %1020 = vmatpush1.msra.mxu0 0.0
    %1021 = vmatprep.subr.mxu0 0.0
    %1022 = vmatpush1.msra.mxu0 0.0
    %1023 = vmatprep.subr.mxu0 0.0
    %1024 = vmatpush1.msra.mxu0 0.0
    %1025 = vmatprep.subr.mxu0 0.0
    %1026 = vmatpush1.msra.mxu0 0.0
    %1027 = vmatprep.subr.mxu0 0.0
    %1028 = vmatpush1.msra.mxu0 0.0
    %1029 = vmatprep.subr.mxu0 0.0
    %1030 = vmatpush1.msra.mxu0 0.0
    %1031 = vmatprep.subr.mxu0 0.0
    %1032 = vmatpush1.msra.mxu0 0.0
    %1033 = vmatprep.mubr.f32.mxu0 0.0
    %1034 = vmatmul.mubr.f32.gmra.mrb[0].mxu0 %v961
    %v1035 = vpop.f32.mrb[0].mxu0
    %v1036 = vadd.f32 %v957, %v1035
    %v1037 = vpop.f32.mrb[0].mxu0
    %1038 = vmatprep.mubr.f32.mxu0 0.0
    %1039 = vmatmul.mubr.f32.gmra.mrb[0].mxu0 %v964
    %v1040 = vpop.f32.mrb[0].mxu0
    %v1041 = vadd.f32 %v957, %v1040
    %v1042 = vpop.f32.mrb[0].mxu0
    %1043 = vmatprep.mubr.f32.mxu0 0.0
    %1044 = vmatmul.mubr.f32.gmra.mrb[0].mxu0 %v967
    %v1045 = vpop.f32.mrb[0].mxu0
    %v1046 = vadd.f32 %v957, %v1045
    %v1047 = vpop.f32.mrb[0].mxu0
    %1048 = vdwg.mxu0
    %v1049 = vmax.f32 %v1036, 0.0
    %v1050 = vmax.f32 %v1041, 0.0
    %v1051 = vmax.f32 %v1046, 0.0
    %v1052 = vld [vmem:[%s3] sm:$0xff]
    %v1053 = vld [vmem:[%s3 + $0x8] sm:$0xff]
    %v1054 = vld [vmem:[%s3 + $0x10] sm:$0xff]
    %v1055 = vld [vmem:[%s3 + $0x18] sm:$0xff]
    %v1056 = vld [vmem:[%s3 + $0x20] sm:$0xff]
    %v1057 = vld [vmem:[%s3 + $0x28] sm:$0xff]
    %v1058 = vld [vmem:[%s3 + $0x30] sm:$0xff]
    %v1059 = vld [vmem:[%s3 + $0x38] sm:$0xff]
    %v1060 = vld [vmem:[%s3 + $0x40] sm:$0xff]
    %v1061 = vld [vmem:[%s3 + $0x48] sm:$0xff]
    %v1062 = vld [vmem:[%s3 + $0x50] sm:$0xff]
    %v1063 = vld [vmem:[%s3 + $0x58] sm:$0xff]
    %v1064 = vld [vmem:[%s3 + $0x60] sm:$0xff]
    %v1065 = vld [vmem:[%s3 + $0x68] sm:$0xff]
    %v1066 = vld [vmem:[%s3 + $0x70] sm:$0xff]
    %v1067 = vld [vmem:[%s3 + $0x78] sm:$0xff]
    %v1068 = vld [vmem:[%s3 + $0x80] sm:$0xff]
    %v1069 = vld [vmem:[%s3 + $0x88] sm:$0xff]
    %v1070 = vld [vmem:[%s3 + $0x90] sm:$0xff]
    %v1071 = vld [vmem:[%s3 + $0x98] sm:$0xff]
    %v1072 = vld [vmem:[%s3 + $0xa0] sm:$0xff]
    %v1073 = vld [vmem:[%s3 + $0xa8] sm:$0xff]
    %v1074 = vld [vmem:[%s3 + $0xb0] sm:$0xff]
    %v1075 = vld [vmem:[%s3 + $0xb8] sm:$0xff]
    %v1076 = vld [vmem:[%s3 + $0xc0] sm:$0xff]
    %v1077 = vld [vmem:[%s3 + $0xc8] sm:$0xff]
    %v1078 = vld [vmem:[%s3 + $0xd0] sm:$0xff]
    %v1079 = vld [vmem:[%s3 + $0xd8] sm:$0xff]
    %v1080 = vld [vmem:[%s3 + $0xe0] sm:$0xff]
    %v1081 = vld [vmem:[%s3 + $0xe8] sm:$0xff]
    %v1082 = vld [vmem:[%s3 + $0xf0] sm:$0xff]
    %v1083 = vld [vmem:[%s3 + $0xf8] sm:$0xff]
    %v1084 = vld [vmem:[%s3 + $0x100] sm:$0xff]
    %v1085 = vld [vmem:[%s3 + $0x108] sm:$0xff]
    %v1086 = vld [vmem:[%s3 + $0x110] sm:$0xff]
    %v1087 = vld [vmem:[%s3 + $0x118] sm:$0xff]
    %v1088 = vld [vmem:[%s3 + $0x120] sm:$0xff]
    %v1089 = vld [vmem:[%s3 + $0x128] sm:$0xff]
    %v1090 = vld [vmem:[%s3 + $0x130] sm:$0xff]
    %v1091 = vld [vmem:[%s3 + $0x138] sm:$0xff]
    %v1092 = vld [vmem:[%s3 + $0x140] sm:$0xff]
    %v1093 = vld [vmem:[%s3 + $0x148] sm:$0xff]
    %v1094 = vld [vmem:[%s3 + $0x150] sm:$0xff]
    %v1095 = vld [vmem:[%s3 + $0x158] sm:$0xff]
    %v1096 = vld [vmem:[%s3 + $0x160] sm:$0xff]
    %v1097 = vld [vmem:[%s3 + $0x168] sm:$0xff]
    %v1098 = vld [vmem:[%s3 + $0x170] sm:$0xff]
    %v1099 = vld [vmem:[%s3 + $0x178] sm:$0xff]
    %v1100 = vld [vmem:[%s3 + $0x180] sm:$0xff]
    %v1101 = vld [vmem:[%s3 + $0x188] sm:$0xff]
    %v1102 = vld [vmem:[%s3 + $0x190] sm:$0xff]
    %v1103 = vld [vmem:[%s3 + $0x198] sm:$0xff]
    %v1104 = vld [vmem:[%s3 + $0x1a0] sm:$0xff]
    %v1105 = vld [vmem:[%s3 + $0x1a8] sm:$0xff]
    %v1106 = vld [vmem:[%s3 + $0x1b0] sm:$0xff]
    %v1107 = vld [vmem:[%s3 + $0x1b8] sm:$0xff]
    %v1108 = vld [vmem:[%s3 + $0x1c0] sm:$0xff]
    %v1109 = vld [vmem:[%s3 + $0x1c8] sm:$0xff]
    %v1110 = vld [vmem:[%s3 + $0x1d0] sm:$0xff]
    %v1111 = vld [vmem:[%s3 + $0x1d8] sm:$0xff]
    %v1112 = vld [vmem:[%s3 + $0x1e0] sm:$0xff]
    %v1113 = vld [vmem:[%s3 + $0x1e8] sm:$0xff]
    %v1114 = vld [vmem:[%s3 + $0x1f0] sm:$0xff]
    %v1115 = vld [vmem:[%s3 + $0x1f8] sm:$0xff]
    %v1116 = vld [vmem:[%s3 + $0x200] sm:$0xff]
    %v1117 = vld [vmem:[%s3 + $0x208] sm:$0xff]
    %v1118 = vld [vmem:[%s3 + $0x210] sm:$0xff]
    %v1119 = vld [vmem:[%s3 + $0x218] sm:$0xff]
    %v1120 = vld [vmem:[%s3 + $0x220] sm:$0xff]
    %v1121 = vld [vmem:[%s3 + $0x228] sm:$0xff]
    %v1122 = vld [vmem:[%s3 + $0x230] sm:$0xff]
    %v1123 = vld [vmem:[%s3 + $0x238] sm:$0xff]
    %v1124 = vld [vmem:[%s3 + $0x240] sm:$0xff]
    %v1125 = vld [vmem:[%s3 + $0x248] sm:$0xff]
    %v1126 = vld [vmem:[%s3 + $0x250] sm:$0xff]
    %v1127 = vld [vmem:[%s3 + $0x258] sm:$0xff]
    %v1128 = vld [vmem:[%s3 + $0x260] sm:$0xff]
    %v1129 = vld [vmem:[%s3 + $0x268] sm:$0xff]
    %v1130 = vld [vmem:[%s3 + $0x270] sm:$0xff]
    %v1131 = vld [vmem:[%s3 + $0x278] sm:$0xff]
    %1132 = vmatprep.subr.mxu0 %v1053
    %1133 = vmatpush1.msra.mxu0 %v1052
    %1134 = vmatprep.subr.mxu0 %v1058
    %1135 = vmatpush1.msra.mxu0 %v1057
    %1136 = vmatprep.subr.mxu0 %v1063
    %1137 = vmatpush1.msra.mxu0 %v1062
    %1138 = vmatprep.subr.mxu0 %v1068
    %1139 = vmatpush1.msra.mxu0 %v1067
    %1140 = vmatprep.subr.mxu0 %v1073
    %1141 = vmatpush1.msra.mxu0 %v1072
    %1142 = vmatprep.subr.mxu0 %v1078
    %1143 = vmatpush1.msra.mxu0 %v1077
    %1144 = vmatprep.subr.mxu0 %v1083
    %1145 = vmatpush1.msra.mxu0 %v1082
    %1146 = vmatprep.subr.mxu0 %v1088
    %1147 = vmatpush1.msra.mxu0 %v1087
    %1148 = vmatprep.subr.mxu0 %v1093
    %1149 = vmatpush1.msra.mxu0 %v1092
    %1150 = vmatprep.subr.mxu0 %v1098
    %1151 = vmatpush1.msra.mxu0 %v1097
    %1152 = vmatprep.subr.mxu0 %v1103
    %1153 = vmatpush1.msra.mxu0 %v1102
    %1154 = vmatprep.subr.mxu0 %v1108
    %1155 = vmatpush1.msra.mxu0 %v1107
    %1156 = vmatprep.subr.mxu0 %v1113
    %1157 = vmatpush1.msra.mxu0 %v1112
    %1158 = vmatprep.subr.mxu0 %v1118
    %1159 = vmatpush1.msra.mxu0 %v1117
    %1160 = vmatprep.subr.mxu0 %v1123
    %1161 = vmatpush1.msra.mxu0 %v1122
    %1162 = vmatprep.subr.mxu0 %v1128
    %1163 = vmatpush1.msra.mxu0 %v1127
    %1164 = vmatprep.subr.mxu0 0.0
    %1165 = vmatpush1.msra.mxu0 0.0
    %1166 = vmatprep.subr.mxu0 0.0
    %1167 = vmatpush1.msra.mxu0 0.0
    %1168 = vmatprep.subr.mxu0 0.0
    %1169 = vmatpush1.msra.mxu0 0.0
    %1170 = vmatprep.subr.mxu0 0.0
    %1171 = vmatpush1.msra.mxu0 0.0
    %1172 = vmatprep.subr.mxu0 0.0
    %1173 = vmatpush1.msra.mxu0 0.0
    %1174 = vmatprep.subr.mxu0 0.0
    %1175 = vmatpush1.msra.mxu0 0.0
    %1176 = vmatprep.subr.mxu0 0.0
    %1177 = vmatpush1.msra.mxu0 0.0
    %1178 = vmatprep.subr.mxu0 0.0
    %1179 = vmatpush1.msra.mxu0 0.0
    %1180 = vmatprep.subr.mxu0 0.0
    %1181 = vmatpush1.msra.mxu0 0.0
    %1182 = vmatprep.subr.mxu0 0.0
    %1183 = vmatpush1.msra.mxu0 0.0
    %1184 = vmatprep.subr.mxu0 0.0
    %1185 = vmatpush1.msra.mxu0 0.0
    %1186 = vmatprep.subr.mxu0 0.0
    %1187 = vmatpush1.msra.mxu0 0.0
    %1188 = vmatprep.subr.mxu0 0.0
    %1189 = vmatpush1.msra.mxu0 0.0
    %1190 = vmatprep.subr.mxu0 0.0
    %1191 = vmatpush1.msra.mxu0 0.0
    %1192 = vmatprep.subr.mxu0 0.0
    %1193 = vmatpush1.msra.mxu0 0.0
    %1194 = vmatprep.subr.mxu0 0.0
    %1195 = vmatpush1.msra.mxu0 0.0
    %1196 = vmatprep.mubr.f32.mxu0 0.0
    %1197 = vmatmul.mubr.f32.gmra.mrb[0].mxu0 %v1049
    %v1198 = vpop.f32.mrb[0].mxu0
    %v1199 = vadd.f32 0.0, %v1198
    %v1200 = vpop.f32.mrb[0].mxu0
    %v1201 = vadd.f32 0.0, %v1200
    %1202 = vmatprep.mubr.f32.mxu0 0.0
    %1203 = vmatmul.mubr.f32.gmra.mrb[0].mxu0 %v1050
    %v1204 = vpop.f32.mrb[0].mxu0
    %v1205 = vadd.f32 0.0, %v1204
    %v1206 = vpop.f32.mrb[0].mxu0
    %v1207 = vadd.f32 0.0, %v1206
    %1208 = vmatprep.mubr.f32.mxu0 0.0
    %1209 = vmatmul.mubr.f32.gmra.mrb[0].mxu0 %v1051
    %v1210 = vpop.f32.mrb[0].mxu0
    %v1211 = vadd.f32 0.0, %v1210
    %v1212 = vpop.f32.mrb[0].mxu0
    %v1213 = vadd.f32 0.0, %v1212
    %1214 = vdwg.mxu0
    %1215 = vmatprep.subr.mxu0 %v1055
    %1216 = vmatpush1.msra.mxu0 %v1054
    %1217 = vmatprep.subr.mxu0 %v1060
    %1218 = vmatpush1.msra.mxu0 %v1059
    %1219 = vmatprep.subr.mxu0 %v1065
    %1220 = vmatpush1.msra.mxu0 %v1064
    %1221 = vmatprep.subr.mxu0 %v1070
    %1222 = vmatpush1.msra.mxu0 %v1069
    %1223 = vmatprep.subr.mxu0 %v1075
    %1224 = vmatpush1.msra.mxu0 %v1074
    %1225 = vmatprep.subr.mxu0 %v1080
    %1226 = vmatpush1.msra.mxu0 %v1079
    %1227 = vmatprep.subr.mxu0 %v1085
    %1228 = vmatpush1.msra.mxu0 %v1084
    %1229 = vmatprep.subr.mxu0 %v1090
    %1230 = vmatpush1.msra.mxu0 %v1089
    %1231 = vmatprep.subr.mxu0 %v1095
    %1232 = vmatpush1.msra.mxu0 %v1094
    %1233 = vmatprep.subr.mxu0 %v1100
    %1234 = vmatpush1.msra.mxu0 %v1099
    %1235 = vmatprep.subr.mxu0 %v1105
    %1236 = vmatpush1.msra.mxu0 %v1104
    %1237 = vmatprep.subr.mxu0 %v1110
    %1238 = vmatpush1.msra.mxu0 %v1109
    %1239 = vmatprep.subr.mxu0 %v1115
    %1240 = vmatpush1.msra.mxu0 %v1114
    %1241 = vmatprep.subr.mxu0 %v1120
    %1242 = vmatpush1.msra.mxu0 %v1119
    %1243 = vmatprep.subr.mxu0 %v1125
    %1244 = vmatpush1.msra.mxu0 %v1124
    %1245 = vmatprep.subr.mxu0 %v1130
    %1246 = vmatpush1.msra.mxu0 %v1129
    %1247 = vmatprep.subr.mxu0 0.0
    %1248 = vmatpush1.msra.mxu0 0.0
    %1249 = vmatprep.subr.mxu0 0.0
    %1250 = vmatpush1.msra.mxu0 0.0
    %1251 = vmatprep.subr.mxu0 0.0
    %1252 = vmatpush1.msra.mxu0 0.0
    %1253 = vmatprep.subr.mxu0 0.0
    %1254 = vmatpush1.msra.mxu0 0.0
    %1255 = vmatprep.subr.mxu0 0.0
    %1256 = vmatpush1.msra.mxu0 0.0
    %1257 = vmatprep.subr.mxu0 0.0
    %1258 = vmatpush1.msra.mxu0 0.0
    %1259 = vmatprep.subr.mxu0 0.0
    %1260 = vmatpush1.msra.mxu0 0.0
    %1261 = vmatprep.subr.mxu0 0.0
    %1262 = vmatpush1.msra.mxu0 0.0
    %1263 = vmatprep.subr.mxu0 0.0
    %1264 = vmatpush1.msra.mxu0 0.0
    %1265 = vmatprep.subr.mxu0 0.0
    %1266 = vmatpush1.msra.mxu0 0.0
    %1267 = vmatprep.subr.mxu0 0.0
    %1268 = vmatpush1.msra.mxu0 0.0
    %1269 = vmatprep.subr.mxu0 0.0
    %1270 = vmatpush1.msra.mxu0 0.0
    %1271 = vmatprep.subr.mxu0 0.0
    %1272 = vmatpush1.msra.mxu0 0.0
    %1273 = vmatprep.subr.mxu0 0.0
    %1274 = vmatpush1.msra.mxu0 0.0
    %1275 = vmatprep.subr.mxu0 0.0
    %1276 = vmatpush1.msra.mxu0 0.0
    %1277 = vmatprep.subr.mxu0 0.0
    %1278 = vmatpush1.msra.mxu0 0.0
    %1279 = vmatprep.mubr.f32.mxu0 0.0
    %1280 = vmatmul.mubr.f32.gmra.mrb[0].mxu0 %v1049
    %v1281 = vpop.f32.mrb[0].mxu0
    %v1282 = vadd.f32 0.0, %v1281
    %v1283 = vpop.f32.mrb[0].mxu0
    %v1284 = vadd.f32 0.0, %v1283
    %1285 = vmatprep.mubr.f32.mxu0 0.0
    %1286 = vmatmul.mubr.f32.gmra.mrb[0].mxu0 %v1050
    %v1287 = vpop.f32.mrb[0].mxu0
    %v1288 = vadd.f32 0.0, %v1287
    %v1289 = vpop.f32.mrb[0].mxu0
    %v1290 = vadd.f32 0.0, %v1289
    %1291 = vmatprep.mubr.f32.mxu0 0.0
    %1292 = vmatmul.mubr.f32.gmra.mrb[0].mxu0 %v1051
    %v1293 = vpop.f32.mrb[0].mxu0
    %v1294 = vadd.f32 0.0, %v1293
    %v1295 = vpop.f32.mrb[0].mxu0
    %v1296 = vadd.f32 0.0, %v1295
    %1297 = vdwg.mxu0
    %1298 = vmatprep.subr.mxu0 0.0
    %1299 = vmatpush1.msra.mxu0 %v1056
    %1300 = vmatprep.subr.mxu0 0.0
    %1301 = vmatpush1.msra.mxu0 %v1061
    %1302 = vmatprep.subr.mxu0 0.0
    %1303 = vmatpush1.msra.mxu0 %v1066
    %1304 = vmatprep.subr.mxu0 0.0
    %1305 = vmatpush1.msra.mxu0 %v1071
    %1306 = vmatprep.subr.mxu0 0.0
    %1307 = vmatpush1.msra.mxu0 %v1076
    %1308 = vmatprep.subr.mxu0 0.0
    %1309 = vmatpush1.msra.mxu0 %v1081
    %1310 = vmatprep.subr.mxu0 0.0
    %1311 = vmatpush1.msra.mxu0 %v1086
    %1312 = vmatprep.subr.mxu0 0.0
    %1313 = vmatpush1.msra.mxu0 %v1091
    %1314 = vmatprep.subr.mxu0 0.0
    %1315 = vmatpush1.msra.mxu0 %v1096
    %1316 = vmatprep.subr.mxu0 0.0
    %1317 = vmatpush1.msra.mxu0 %v1101
    %1318 = vmatprep.subr.mxu0 0.0
    %1319 = vmatpush1.msra.mxu0 %v1106
    %1320 = vmatprep.subr.mxu0 0.0
    %1321 = vmatpush1.msra.mxu0 %v1111
    %1322 = vmatprep.subr.mxu0 0.0
    %1323 = vmatpush1.msra.mxu0 %v1116
    %1324 = vmatprep.subr.mxu0 0.0
    %1325 = vmatpush1.msra.mxu0 %v1121
    %1326 = vmatprep.subr.mxu0 0.0
    %1327 = vmatpush1.msra.mxu0 %v1126
    %1328 = vmatprep.subr.mxu0 0.0
    %1329 = vmatpush1.msra.mxu0 %v1131
    %1330 = vmatprep.subr.mxu0 0.0
    %1331 = vmatpush1.msra.mxu0 0.0
    %1332 = vmatprep.subr.mxu0 0.0
    %1333 = vmatpush1.msra.mxu0 0.0
    %1334 = vmatprep.subr.mxu0 0.0
    %1335 = vmatpush1.msra.mxu0 0.0
    %1336 = vmatprep.subr.mxu0 0.0
    %1337 = vmatpush1.msra.mxu0 0.0
    %1338 = vmatprep.subr.mxu0 0.0
    %1339 = vmatpush1.msra.mxu0 0.0
    %1340 = vmatprep.subr.mxu0 0.0
    %1341 = vmatpush1.msra.mxu0 0.0
    %1342 = vmatprep.subr.mxu0 0.0
    %1343 = vmatpush1.msra.mxu0 0.0
    %1344 = vmatprep.subr.mxu0 0.0
    %1345 = vmatpush1.msra.mxu0 0.0
    %1346 = vmatprep.subr.mxu0 0.0
    %1347 = vmatpush1.msra.mxu0 0.0
    %1348 = vmatprep.subr.mxu0 0.0
    %1349 = vmatpush1.msra.mxu0 0.0
    %1350 = vmatprep.subr.mxu0 0.0
    %1351 = vmatpush1.msra.mxu0 0.0
    %1352 = vmatprep.subr.mxu0 0.0
    %1353 = vmatpush1.msra.mxu0 0.0
    %1354 = vmatprep.subr.mxu0 0.0
    %1355 = vmatpush1.msra.mxu0 0.0
    %1356 = vmatprep.subr.mxu0 0.0
    %1357 = vmatpush1.msra.mxu0 0.0
    %1358 = vmatprep.subr.mxu0 0.0
    %1359 = vmatpush1.msra.mxu0 0.0
    %1360 = vmatprep.subr.mxu0 0.0
    %1361 = vmatpush1.msra.mxu0 0.0
    %1362 = vmatprep.mubr.f32.mxu0 0.0
    %1363 = vmatmul.mubr.f32.gmra.mrb[0].mxu0 %v1049
    %v1364 = vpop.f32.mrb[0].mxu0
    %v1365 = vadd.f32 0.0, %v1364
    %v1366 = vpop.f32.mrb[0].mxu0
    %1367 = vmatprep.mubr.f32.mxu0 0.0
    %1368 = vmatmul.mubr.f32.gmra.mrb[0].mxu0 %v1050
    %v1369 = vpop.f32.mrb[0].mxu0
    %v1370 = vadd.f32 0.0, %v1369
    %v1371 = vpop.f32.mrb[0].mxu0
    %1372 = vmatprep.mubr.f32.mxu0 0.0
    %1373 = vmatmul.mubr.f32.gmra.mrb[0].mxu0 %v1051
    %v1374 = vpop.f32.mrb[0].mxu0
    %v1375 = vadd.f32 0.0, %v1374
    %v1376 = vpop.f32.mrb[0].mxu0
    %1377 = vdwg.mxu0
    %v1378 = vrot.slane %v1201, 1
    %v1379 = vrot.slane %v1207, 1
    %v1380 = vrot.slane %v1213, 1
    %v1381 = vsel %vm763, %v1379, %v1380
    %v1382 = vsel %vm763, %v1378, %v1379
    %v1383 = vsel %vm763, %v1380, %v1378
    %v1384 = vadd.f32 %v1199, %v1382
    %v1385 = vadd.f32 %v1205, %v1381
    %v1386 = vadd.f32 %v1211, %v1383
    %v1387 = vrot.slane %v1282, 2
    %v1388 = vrot.slane %v1288, 2
    %v1389 = vrot.slane %v1294, 2
    %v1390 = vsel %vm806, %v1388, %v1389
    %v1391 = vsel %vm806, %v1387, %v1388
    %v1392 = vsel %vm806, %v1389, %v1387
    %v1393 = vadd.f32 %v1384, %v1391
    %v1394 = vadd.f32 %v1385, %v1390
    %v1395 = vadd.f32 %v1386, %v1392
    %v1396 = vrot.slane %v1284, 3
    %v1397 = vrot.slane %v1290, 3
    %v1398 = vrot.slane %v1296, 3
    %v1399 = vsel %vm849, %v1397, %v1398
    %v1400 = vsel %vm849, %v1396, %v1397
    %v1401 = vsel %vm849, %v1398, %v1396
    %v1402 = vadd.f32 %v1393, %v1400
    %v1403 = vadd.f32 %v1394, %v1399
    %v1404 = vadd.f32 %v1395, %v1401
    %v1405 = vrot.slane %v1365, 4
    %v1406 = vrot.slane %v1370, 4
    %v1407 = vrot.slane %v1375, 4
    %v1408 = vsel %vm892, %v1406, %v1407
    %v1409 = vsel %vm892, %v1405, %v1406
    %v1410 = vsel %vm892, %v1407, %v1405
    %v1411 = vadd.f32 %v1402, %v1409
    %v1412 = vadd.f32 %v1403, %v1408
    %v1413 = vadd.f32 %v1404, %v1410
    %v1414 = vld [vmem:[%s7] sm:$0xff]
    %v1415 = vld [vmem:[%s7 + $0x8] sm:$0xff]
    %v1416 = vld [vmem:[%s7 + $0x10] sm:$0xff]
    %v1417 = vld [vmem:[%s4] sm:$0x1]
    %v1419 = vlaneseq
    %v1420 = vshrl.u32 %v1419, 7
    %v1421 = vsub.s32 0, %v1420
    %v1422 = vrot.slane %v1417, %v1421
    %v1424 = vadd.f32 %v1411, %v1422
    %v1425 = vadd.f32 %v1412, %v1422
    %v1426 = vadd.f32 %v1413, %v1422
    %v1427 = vmax.f32 %v1424, 0.0
    %v1428 = vmax.f32 %v1425, 0.0
    %v1429 = vmax.f32 %v1426, 0.0
    %1431 = vset.pattern.permute.xlu0 0
    %1432 = vperm.xlu0 %1431, %v1414
    %v1433 = vpop.permute.xlu0 %1432
    %1436 = vset.pattern.permute.xlu0 0
    %1437 = vperm.xlu0 %1436, %v1415
    %v1438 = vpop.permute.xlu0 %1437
    %1441 = vset.pattern.permute.xlu0 0
    %1442 = vperm.xlu0 %1441, %v1416
    %v1443 = vpop.permute.xlu0 %1442
    %v1445 = vmul.f32 %v1427, %v1433
    %v1446 = vmul.f32 %v1428, %v1438
    %v1447 = vmul.f32 %v1429, %v1443
    %v1448 = vlaneseq
    %v1449 = vand.u32 %v1448, 127
    %1450 = vrot.lane.b32.xlu0 %v1445, 16
    %v1451 = vpop.permute.xlu0 %1450
    %1452 = vrot.lane.b32.xlu0 %v1446, 16
    %v1453 = vpop.permute.xlu0 %1452
    %1454 = vrot.lane.b32.xlu0 %v1447, 16
    %v1455 = vpop.permute.xlu0 %1454
    %vm1456 = vcmp.ge.s32.totalorder %v1449, 16
    %v1457 = vsel %vm1456, %v1451, 0.0
    %v1458 = vsel %vm1456, %v1453, 0.0
    %v1459 = vsel %vm1456, %v1455, 0.0
    %v1460 = vmax.f32 %v1445, %v1457
    %v1461 = vmax.f32 %v1446, %v1458
    %v1462 = vmax.f32 %v1447, %v1459
    %vm1463 = vcmp.ge.s32.totalorder %v1449, 112
    %v1464 = vsel %vm1463, %v1445, %v1460
    %v1465 = vsel %vm1463, %v1446, %v1461
    %v1466 = vsel %vm1463, %v1447, %v1462
    %v1467 = vrot.slane %v1464, 7
    %v1468 = vrot.slane %v1465, 7
    %v1469 = vrot.slane %v1466, 7
    %vm1470 = vcmp.lt.s32.totalorder %v762, 1
    %v1471 = vsel %vm1470, %v1468, %v1469
    %v1472 = vsel %vm1470, %v1467, %v1468
    %v1473 = vsel %vm1470, %v1469, %v1467
    %v1474 = vmax.f32 %v1464, %v1473
    %v1475 = vmax.f32 %v1465, %v1472
    %v1476 = vmax.f32 %v1466, %v1471
    %1477 = vset.pattern.permute.xlu0 1
    %1478 = vperm.xlu0 %1477, %v1414
    %v1479 = vpop.permute.xlu0 %1478
    %1481 = vset.pattern.permute.xlu0 1
    %1482 = vperm.xlu0 %1481, %v1415
    %v1483 = vpop.permute.xlu0 %1482
    %1485 = vset.pattern.permute.xlu0 1
    %1486 = vperm.xlu0 %1485, %v1416
    %v1487 = vpop.permute.xlu0 %1486
    %v1489 = vmul.f32 %v1479, %v1464
    %v1490 = vmul.f32 %v1483, %v1465
    %v1491 = vmul.f32 %v1487, %v1466
    %v1492 = vsub.f32 1.0, %v1414
    %v1493 = vsub.f32 1.0, %v1415
    %v1494 = vsub.f32 1.0, %v1416
    %1496 = vset.pattern.permute.xlu0 1
    %1497 = vperm.xlu0 %1496, %v1492
    %v1498 = vpop.permute.xlu0 %1497
    %1501 = vset.pattern.permute.xlu0 1
    %1502 = vperm.xlu0 %1501, %v1493
    %v1503 = vpop.permute.xlu0 %1502
    %1506 = vset.pattern.permute.xlu0 1
    %1507 = vperm.xlu0 %1506, %v1494
    %v1508 = vpop.permute.xlu0 %1507
    %v1510 = vmul.f32 %v1498, %v1474
    %v1511 = vmul.f32 %v1503, %v1475
    %v1512 = vmul.f32 %v1508, %v1476
    %v1513 = vadd.f32 %v1489, %v1510
    %v1514 = vadd.f32 %v1490, %v1511
    %v1515 = vadd.f32 %v1491, %v1512
    %v1516 = vld [vmem:[%s6] sm:$0xff]
    %v1517 = vld [vmem:[%s6 + $0x8] sm:$0x3]
    %vm1518 = vcmask 195584
    %v1520 = vsel %vm1518, %v1516, 0
    %v1523 = vsel %vm1518, %v1517, 0
    %1525 = vmatprep.subr.mxu0 0.0
    %1526 = vmatpush1.msra.mxu0 %v1513
    %1527 = vmatprep.subr.mxu0 0.0
    %1528 = vmatpush1.msra.mxu0 %v1514
    %1529 = vmatprep.subr.mxu0 0.0
    %1530 = vmatpush1.msra.mxu0 %v1515
    %1531 = vmatprep.subr.mxu0 0.0
    %1532 = vmatpush1.msra.mxu0 0.0
    %1533 = vmatprep.subr.mxu0 0.0
    %1534 = vmatpush1.msra.mxu0 0.0
    %1535 = vmatprep.subr.mxu0 0.0
    %1536 = vmatpush1.msra.mxu0 0.0
    %1537 = vmatprep.subr.mxu0 0.0
    %1538 = vmatpush1.msra.mxu0 0.0
    %1539 = vmatprep.subr.mxu0 0.0
    %1540 = vmatpush1.msra.mxu0 0.0
    %1541 = vmatprep.subr.mxu0 0.0
    %1542 = vmatpush1.msra.mxu0 0.0
    %1543 = vmatprep.subr.mxu0 0.0
    %1544 = vmatpush1.msra.mxu0 0.0
    %1545 = vmatprep.subr.mxu0 0.0
    %1546 = vmatpush1.msra.mxu0 0.0
    %1547 = vmatprep.subr.mxu0 0.0
    %1548 = vmatpush1.msra.mxu0 0.0
    %1549 = vmatprep.subr.mxu0 0.0
    %1550 = vmatpush1.msra.mxu0 0.0
    %1551 = vmatprep.subr.mxu0 0.0
    %1552 = vmatpush1.msra.mxu0 0.0
    %1553 = vmatprep.subr.mxu0 0.0
    %1554 = vmatpush1.msra.mxu0 0.0
    %1555 = vmatprep.subr.mxu0 0.0
    %1556 = vmatpush1.msra.mxu0 0.0
    %1557 = vmatprep.subr.mxu0 0.0
    %1558 = vmatpush1.msra.mxu0 0.0
    %1559 = vmatprep.subr.mxu0 0.0
    %1560 = vmatpush1.msra.mxu0 0.0
    %1561 = vmatprep.subr.mxu0 0.0
    %1562 = vmatpush1.msra.mxu0 0.0
    %1563 = vmatprep.subr.mxu0 0.0
    %1564 = vmatpush1.msra.mxu0 0.0
    %1565 = vmatprep.subr.mxu0 0.0
    %1566 = vmatpush1.msra.mxu0 0.0
    %1567 = vmatprep.subr.mxu0 0.0
    %1568 = vmatpush1.msra.mxu0 0.0
    %1569 = vmatprep.subr.mxu0 0.0
    %1570 = vmatpush1.msra.mxu0 0.0
    %1571 = vmatprep.subr.mxu0 0.0
    %1572 = vmatpush1.msra.mxu0 0.0
    %1573 = vmatprep.subr.mxu0 0.0
    %1574 = vmatpush1.msra.mxu0 0.0
    %1575 = vmatprep.subr.mxu0 0.0
    %1576 = vmatpush1.msra.mxu0 0.0
    %1577 = vmatprep.subr.mxu0 0.0
    %1578 = vmatpush1.msra.mxu0 0.0
    %1579 = vmatprep.subr.mxu0 0.0
    %1580 = vmatpush1.msra.mxu0 0.0
    %1581 = vmatprep.subr.mxu0 0.0
    %1582 = vmatpush1.msra.mxu0 0.0
    %1583 = vmatprep.subr.mxu0 0.0
    %1584 = vmatpush1.msra.mxu0 0.0
    %1585 = vmatprep.subr.mxu0 0.0
    %1586 = vmatpush1.msra.mxu0 0.0
    %1587 = vmatprep.subr.mxu0 0.0
    %1588 = vmatpush1.msra.mxu0 0.0
    %1589 = vmatprep.mubr.f32.mxu0 0.0
    %1590 = vmatmul.mubr.f32.gmra.mrb[0].mxu0 %v1520
    %v1591 = vpop.f32.mrb[0].mxu0
    %v1592 = vadd.f32 0.0, %v1591
    %v1593 = vpop.f32.mrb[0].mxu0
    %1594 = vmatprep.mubr.f32.mxu0 0.0
    %1595 = vmatmul.mubr.f32.gmra.mrb[0].mxu0 %v1523
    %v1596 = vpop.f32.mrb[0].mxu0
    %v1597 = vadd.f32 0.0, %v1596
    %v1598 = vpop.f32.mrb[0].mxu0
    %1599 = vdwg.mxu0
    %v1600 = vld [vmem:[%s9] sm:$0x3]
    %v1601 = vld [vmem:[%s8] sm:$0xff]
    %v1602 = vld [vmem:[%s8 + $0x8] sm:$0xff]
    %v1603 = vld [vmem:[%s8 + $0x10] sm:$0xff]
    %v1604 = vld [vmem:[%s8 + $0x18] sm:$0xff]
    %v1605 = vld [vmem:[%s8 + $0x20] sm:$0xff]
    %v1606 = vld [vmem:[%s8 + $0x28] sm:$0xff]
    %v1607 = vld [vmem:[%s8 + $0x30] sm:$0xff]
    %v1608 = vld [vmem:[%s8 + $0x38] sm:$0xff]
    %v1609 = vld [vmem:[%s8 + $0x40] sm:$0xff]
    %v1610 = vld [vmem:[%s8 + $0x48] sm:$0xff]
    %v1611 = vld [vmem:[%s8 + $0x50] sm:$0xff]
    %v1612 = vld [vmem:[%s8 + $0x58] sm:$0xff]
    %v1613 = vld [vmem:[%s8 + $0x60] sm:$0xff]
    %v1614 = vld [vmem:[%s8 + $0x68] sm:$0xff]
    %v1615 = vld [vmem:[%s8 + $0x70] sm:$0xff]
    %v1616 = vld [vmem:[%s8 + $0x78] sm:$0xff]
    %v1617 = vld [vmem:[%s8 + $0x80] sm:$0xff]
    %v1618 = vld [vmem:[%s8 + $0x88] sm:$0xff]
    %v1619 = vld [vmem:[%s8 + $0x90] sm:$0xff]
    %v1620 = vld [vmem:[%s8 + $0x98] sm:$0xff]
    %v1621 = vld [vmem:[%s8 + $0xa0] sm:$0xff]
    %v1622 = vld [vmem:[%s8 + $0xa8] sm:$0xff]
    %v1623 = vld [vmem:[%s8 + $0xb0] sm:$0xff]
    %v1624 = vld [vmem:[%s8 + $0xb8] sm:$0xff]
    %v1625 = vld [vmem:[%s8 + $0xc0] sm:$0xff]
    %v1626 = vld [vmem:[%s8 + $0xc8] sm:$0xff]
    %v1627 = vld [vmem:[%s8 + $0xd0] sm:$0xff]
    %v1628 = vld [vmem:[%s8 + $0xd8] sm:$0xff]
    %v1629 = vld [vmem:[%s8 + $0xe0] sm:$0xff]
    %v1630 = vld [vmem:[%s8 + $0xe8] sm:$0xff]
    %v1631 = vld [vmem:[%s8 + $0xf0] sm:$0xff]
    %v1632 = vld [vmem:[%s8 + $0xf8] sm:$0xff]
    %1633 = vmatprep.subr.mxu0 %v1602
    %1634 = vmatpush1.msra.mxu0 %v1601
    %1635 = vmatprep.subr.mxu0 %v1604
    %1636 = vmatpush1.msra.mxu0 %v1603
    %1637 = vmatprep.subr.mxu0 %v1606
    %1638 = vmatpush1.msra.mxu0 %v1605
    %1639 = vmatprep.subr.mxu0 %v1608
    %1640 = vmatpush1.msra.mxu0 %v1607
    %1641 = vmatprep.subr.mxu0 %v1610
    %1642 = vmatpush1.msra.mxu0 %v1609
    %1643 = vmatprep.subr.mxu0 %v1612
    %1644 = vmatpush1.msra.mxu0 %v1611
    %1645 = vmatprep.subr.mxu0 %v1614
    %1646 = vmatpush1.msra.mxu0 %v1613
    %1647 = vmatprep.subr.mxu0 %v1616
    %1648 = vmatpush1.msra.mxu0 %v1615
    %1649 = vmatprep.subr.mxu0 %v1618
    %1650 = vmatpush1.msra.mxu0 %v1617
    %1651 = vmatprep.subr.mxu0 %v1620
    %1652 = vmatpush1.msra.mxu0 %v1619
    %1653 = vmatprep.subr.mxu0 %v1622
    %1654 = vmatpush1.msra.mxu0 %v1621
    %1655 = vmatprep.subr.mxu0 %v1624
    %1656 = vmatpush1.msra.mxu0 %v1623
    %1657 = vmatprep.subr.mxu0 %v1626
    %1658 = vmatpush1.msra.mxu0 %v1625
    %1659 = vmatprep.subr.mxu0 %v1628
    %1660 = vmatpush1.msra.mxu0 %v1627
    %1661 = vmatprep.subr.mxu0 %v1630
    %1662 = vmatpush1.msra.mxu0 %v1629
    %1663 = vmatprep.subr.mxu0 %v1632
    %1664 = vmatpush1.msra.mxu0 %v1631
    %1665 = vmatprep.subr.mxu0 0.0
    %1666 = vmatpush1.msra.mxu0 0.0
    %1667 = vmatprep.subr.mxu0 0.0
    %1668 = vmatpush1.msra.mxu0 0.0
    %1669 = vmatprep.subr.mxu0 0.0
    %1670 = vmatpush1.msra.mxu0 0.0
    %1671 = vmatprep.subr.mxu0 0.0
    %1672 = vmatpush1.msra.mxu0 0.0
    %1673 = vmatprep.subr.mxu0 0.0
    %1674 = vmatpush1.msra.mxu0 0.0
    %1675 = vmatprep.subr.mxu0 0.0
    %1676 = vmatpush1.msra.mxu0 0.0
    %1677 = vmatprep.subr.mxu0 0.0
    %1678 = vmatpush1.msra.mxu0 0.0
    %1679 = vmatprep.subr.mxu0 0.0
    %1680 = vmatpush1.msra.mxu0 0.0
    %1681 = vmatprep.subr.mxu0 0.0
    %1682 = vmatpush1.msra.mxu0 0.0
    %1683 = vmatprep.subr.mxu0 0.0
    %1684 = vmatpush1.msra.mxu0 0.0
    %1685 = vmatprep.subr.mxu0 0.0
    %1686 = vmatpush1.msra.mxu0 0.0
    %1687 = vmatprep.subr.mxu0 0.0
    %1688 = vmatpush1.msra.mxu0 0.0
    %1689 = vmatprep.subr.mxu0 0.0
    %1690 = vmatpush1.msra.mxu0 0.0
    %1691 = vmatprep.subr.mxu0 0.0
    %1692 = vmatpush1.msra.mxu0 0.0
    %1693 = vmatprep.subr.mxu0 0.0
    %1694 = vmatpush1.msra.mxu0 0.0
    %1695 = vmatprep.subr.mxu0 0.0
    %1696 = vmatpush1.msra.mxu0 0.0
    %1697 = vmatprep.mubr.f32.mxu0 0.0
    %1698 = vmatmul.mubr.f32.gmra.mrb[0].mxu0 %v1592
    %v1699 = vpop.f32.mrb[0].mxu0
    %v1700 = vadd.f32 0.0, %v1699
    %v1701 = vpop.f32.mrb[0].mxu0
    %v1702 = vadd.f32 0.0, %v1701
    %1703 = vdwg.mxu0
    %v1705 = vlaneseq
    %v1706 = vshrl.u32 %v1705, 7
    %v1707 = vsub.s32 0, %v1706
    %v1708 = vrot.slane %v1600, %v1707
    %v1709 = vlaneseq
    %v1710 = vshrl.u32 %v1709, 7
    %v1711 = vsub.s32 1, %v1710
    %v1712 = vrot.slane %v1600, %v1711
    %v1715 = vadd.f32 %v1708, %v1700
    %v1716 = vadd.f32 %v1712, %v1702
    %s1717 = scalar_lea.vmem %s8, 256
    %v1718 = vld [vmem:[%s1717] sm:$0xff]
    %v1719 = vld [vmem:[%s1717 + $0x8] sm:$0xff]
    %v1720 = vld [vmem:[%s1717 + $0x10] sm:$0xff]
    %v1721 = vld [vmem:[%s1717 + $0x18] sm:$0xff]
    %v1722 = vld [vmem:[%s1717 + $0x20] sm:$0xff]
    %v1723 = vld [vmem:[%s1717 + $0x28] sm:$0xff]
    %v1724 = vld [vmem:[%s1717 + $0x30] sm:$0xff]
    %v1725 = vld [vmem:[%s1717 + $0x38] sm:$0xff]
    %v1726 = vld [vmem:[%s1717 + $0x40] sm:$0xff]
    %v1727 = vld [vmem:[%s1717 + $0x48] sm:$0xff]
    %v1728 = vld [vmem:[%s1717 + $0x50] sm:$0xff]
    %v1729 = vld [vmem:[%s1717 + $0x58] sm:$0xff]
    %v1730 = vld [vmem:[%s1717 + $0x60] sm:$0xff]
    %v1731 = vld [vmem:[%s1717 + $0x68] sm:$0xff]
    %v1732 = vld [vmem:[%s1717 + $0x70] sm:$0xff]
    %v1733 = vld [vmem:[%s1717 + $0x78] sm:$0xff]
    %v1734 = vld [vmem:[%s1717 + $0x80] sm:$0xff]
    %v1735 = vld [vmem:[%s1717 + $0x88] sm:$0xff]
    %v1736 = vld [vmem:[%s1717 + $0x90] sm:$0xff]
    %v1737 = vld [vmem:[%s1717 + $0x98] sm:$0xff]
    %v1738 = vld [vmem:[%s1717 + $0xa0] sm:$0xff]
    %v1739 = vld [vmem:[%s1717 + $0xa8] sm:$0xff]
    %v1740 = vld [vmem:[%s1717 + $0xb0] sm:$0xff]
    %v1741 = vld [vmem:[%s1717 + $0xb8] sm:$0xff]
    %v1742 = vld [vmem:[%s1717 + $0xc0] sm:$0xff]
    %v1743 = vld [vmem:[%s1717 + $0xc8] sm:$0xff]
    %v1744 = vld [vmem:[%s1717 + $0xd0] sm:$0xff]
    %v1745 = vld [vmem:[%s1717 + $0xd8] sm:$0xff]
    %v1746 = vld [vmem:[%s1717 + $0xe0] sm:$0xff]
    %v1747 = vld [vmem:[%s1717 + $0xe8] sm:$0xff]
    %v1748 = vld [vmem:[%s1717 + $0xf0] sm:$0xff]
    %v1749 = vld [vmem:[%s1717 + $0xf8] sm:$0xff]
    %v1751 = vrot.slane %v1592, 2
    %1753 = vmatprep.subr.mxu0 %v1719
    %1754 = vmatpush1.msra.mxu0 %v1718
    %1755 = vmatprep.subr.mxu0 %v1721
    %1756 = vmatpush1.msra.mxu0 %v1720
    %1757 = vmatprep.subr.mxu0 %v1723
    %1758 = vmatpush1.msra.mxu0 %v1722
    %1759 = vmatprep.subr.mxu0 %v1725
    %1760 = vmatpush1.msra.mxu0 %v1724
    %1761 = vmatprep.subr.mxu0 %v1727
    %1762 = vmatpush1.msra.mxu0 %v1726
    %1763 = vmatprep.subr.mxu0 %v1729
    %1764 = vmatpush1.msra.mxu0 %v1728
    %1765 = vmatprep.subr.mxu0 %v1731
    %1766 = vmatpush1.msra.mxu0 %v1730
    %1767 = vmatprep.subr.mxu0 %v1733
    %1768 = vmatpush1.msra.mxu0 %v1732
    %1769 = vmatprep.subr.mxu0 %v1735
    %1770 = vmatpush1.msra.mxu0 %v1734
    %1771 = vmatprep.subr.mxu0 %v1737
    %1772 = vmatpush1.msra.mxu0 %v1736
    %1773 = vmatprep.subr.mxu0 %v1739
    %1774 = vmatpush1.msra.mxu0 %v1738
    %1775 = vmatprep.subr.mxu0 %v1741
    %1776 = vmatpush1.msra.mxu0 %v1740
    %1777 = vmatprep.subr.mxu0 %v1743
    %1778 = vmatpush1.msra.mxu0 %v1742
    %1779 = vmatprep.subr.mxu0 %v1745
    %1780 = vmatpush1.msra.mxu0 %v1744
    %1781 = vmatprep.subr.mxu0 %v1747
    %1782 = vmatpush1.msra.mxu0 %v1746
    %1783 = vmatprep.subr.mxu0 %v1749
    %1784 = vmatpush1.msra.mxu0 %v1748
    %1785 = vmatprep.subr.mxu0 0.0
    %1786 = vmatpush1.msra.mxu0 0.0
    %1787 = vmatprep.subr.mxu0 0.0
    %1788 = vmatpush1.msra.mxu0 0.0
    %1789 = vmatprep.subr.mxu0 0.0
    %1790 = vmatpush1.msra.mxu0 0.0
    %1791 = vmatprep.subr.mxu0 0.0
    %1792 = vmatpush1.msra.mxu0 0.0
    %1793 = vmatprep.subr.mxu0 0.0
    %1794 = vmatpush1.msra.mxu0 0.0
    %1795 = vmatprep.subr.mxu0 0.0
    %1796 = vmatpush1.msra.mxu0 0.0
    %1797 = vmatprep.subr.mxu0 0.0
    %1798 = vmatpush1.msra.mxu0 0.0
    %1799 = vmatprep.subr.mxu0 0.0
    %1800 = vmatpush1.msra.mxu0 0.0
    %1801 = vmatprep.subr.mxu0 0.0
    %1802 = vmatpush1.msra.mxu0 0.0
    %1803 = vmatprep.subr.mxu0 0.0
    %1804 = vmatpush1.msra.mxu0 0.0
    %1805 = vmatprep.subr.mxu0 0.0
    %1806 = vmatpush1.msra.mxu0 0.0
    %1807 = vmatprep.subr.mxu0 0.0
    %1808 = vmatpush1.msra.mxu0 0.0
    %1809 = vmatprep.subr.mxu0 0.0
    %1810 = vmatpush1.msra.mxu0 0.0
    %1811 = vmatprep.subr.mxu0 0.0
    %1812 = vmatpush1.msra.mxu0 0.0
    %1813 = vmatprep.subr.mxu0 0.0
    %1814 = vmatpush1.msra.mxu0 0.0
    %1815 = vmatprep.subr.mxu0 0.0
    %1816 = vmatpush1.msra.mxu0 0.0
    %1817 = vmatprep.mubr.f32.mxu0 0.0
    %1818 = vmatmul.mubr.f32.gmra.mrb[0].mxu0 %v1751
    %v1819 = vpop.f32.mrb[0].mxu0
    %v1820 = vadd.f32 0.0, %v1819
    %v1821 = vpop.f32.mrb[0].mxu0
    %v1822 = vadd.f32 0.0, %v1821
    %1823 = vdwg.mxu0
    %v1824 = vadd.f32 %v1715, %v1820
    %v1825 = vadd.f32 %v1716, %v1822
    %s1826 = scalar_lea.vmem %s8, 512
    %v1827 = vld [vmem:[%s1826] sm:$0xff]
    %v1828 = vld [vmem:[%s1826 + $0x8] sm:$0xff]
    %v1829 = vld [vmem:[%s1826 + $0x10] sm:$0xff]
    %v1830 = vld [vmem:[%s1826 + $0x18] sm:$0xff]
    %v1831 = vld [vmem:[%s1826 + $0x20] sm:$0xff]
    %v1832 = vld [vmem:[%s1826 + $0x28] sm:$0xff]
    %v1833 = vld [vmem:[%s1826 + $0x30] sm:$0xff]
    %v1834 = vld [vmem:[%s1826 + $0x38] sm:$0xff]
    %v1835 = vld [vmem:[%s1826 + $0x40] sm:$0xff]
    %v1836 = vld [vmem:[%s1826 + $0x48] sm:$0xff]
    %v1837 = vld [vmem:[%s1826 + $0x50] sm:$0xff]
    %v1838 = vld [vmem:[%s1826 + $0x58] sm:$0xff]
    %v1839 = vld [vmem:[%s1826 + $0x60] sm:$0xff]
    %v1840 = vld [vmem:[%s1826 + $0x68] sm:$0xff]
    %v1841 = vld [vmem:[%s1826 + $0x70] sm:$0xff]
    %v1842 = vld [vmem:[%s1826 + $0x78] sm:$0xff]
    %v1843 = vld [vmem:[%s1826 + $0x80] sm:$0xff]
    %v1844 = vld [vmem:[%s1826 + $0x88] sm:$0xff]
    %v1845 = vld [vmem:[%s1826 + $0x90] sm:$0xff]
    %v1846 = vld [vmem:[%s1826 + $0x98] sm:$0xff]
    %v1847 = vld [vmem:[%s1826 + $0xa0] sm:$0xff]
    %v1848 = vld [vmem:[%s1826 + $0xa8] sm:$0xff]
    %v1849 = vld [vmem:[%s1826 + $0xb0] sm:$0xff]
    %v1850 = vld [vmem:[%s1826 + $0xb8] sm:$0xff]
    %v1851 = vld [vmem:[%s1826 + $0xc0] sm:$0xff]
    %v1852 = vld [vmem:[%s1826 + $0xc8] sm:$0xff]
    %v1853 = vld [vmem:[%s1826 + $0xd0] sm:$0xff]
    %v1854 = vld [vmem:[%s1826 + $0xd8] sm:$0xff]
    %v1855 = vld [vmem:[%s1826 + $0xe0] sm:$0xff]
    %v1856 = vld [vmem:[%s1826 + $0xe8] sm:$0xff]
    %v1857 = vld [vmem:[%s1826 + $0xf0] sm:$0xff]
    %v1858 = vld [vmem:[%s1826 + $0xf8] sm:$0xff]
    %v1859 = vrot.slane %v1592, 4
    %1861 = vmatprep.subr.mxu0 %v1828
    %1862 = vmatpush1.msra.mxu0 %v1827
    %1863 = vmatprep.subr.mxu0 %v1830
    %1864 = vmatpush1.msra.mxu0 %v1829
    %1865 = vmatprep.subr.mxu0 %v1832
    %1866 = vmatpush1.msra.mxu0 %v1831
    %1867 = vmatprep.subr.mxu0 %v1834
    %1868 = vmatpush1.msra.mxu0 %v1833
    %1869 = vmatprep.subr.mxu0 %v1836
    %1870 = vmatpush1.msra.mxu0 %v1835
    %1871 = vmatprep.subr.mxu0 %v1838
    %1872 = vmatpush1.msra.mxu0 %v1837
    %1873 = vmatprep.subr.mxu0 %v1840
    %1874 = vmatpush1.msra.mxu0 %v1839
    %1875 = vmatprep.subr.mxu0 %v1842
    %1876 = vmatpush1.msra.mxu0 %v1841
    %1877 = vmatprep.subr.mxu0 %v1844
    %1878 = vmatpush1.msra.mxu0 %v1843
    %1879 = vmatprep.subr.mxu0 %v1846
    %1880 = vmatpush1.msra.mxu0 %v1845
    %1881 = vmatprep.subr.mxu0 %v1848
    %1882 = vmatpush1.msra.mxu0 %v1847
    %1883 = vmatprep.subr.mxu0 %v1850
    %1884 = vmatpush1.msra.mxu0 %v1849
    %1885 = vmatprep.subr.mxu0 %v1852
    %1886 = vmatpush1.msra.mxu0 %v1851
    %1887 = vmatprep.subr.mxu0 %v1854
    %1888 = vmatpush1.msra.mxu0 %v1853
    %1889 = vmatprep.subr.mxu0 %v1856
    %1890 = vmatpush1.msra.mxu0 %v1855
    %1891 = vmatprep.subr.mxu0 %v1858
    %1892 = vmatpush1.msra.mxu0 %v1857
    %1893 = vmatprep.subr.mxu0 0.0
    %1894 = vmatpush1.msra.mxu0 0.0
    %1895 = vmatprep.subr.mxu0 0.0
    %1896 = vmatpush1.msra.mxu0 0.0
    %1897 = vmatprep.subr.mxu0 0.0
    %1898 = vmatpush1.msra.mxu0 0.0
    %1899 = vmatprep.subr.mxu0 0.0
    %1900 = vmatpush1.msra.mxu0 0.0
    %1901 = vmatprep.subr.mxu0 0.0
    %1902 = vmatpush1.msra.mxu0 0.0
    %1903 = vmatprep.subr.mxu0 0.0
    %1904 = vmatpush1.msra.mxu0 0.0
    %1905 = vmatprep.subr.mxu0 0.0
    %1906 = vmatpush1.msra.mxu0 0.0
    %1907 = vmatprep.subr.mxu0 0.0
    %1908 = vmatpush1.msra.mxu0 0.0
    %1909 = vmatprep.subr.mxu0 0.0
    %1910 = vmatpush1.msra.mxu0 0.0
    %1911 = vmatprep.subr.mxu0 0.0
    %1912 = vmatpush1.msra.mxu0 0.0
    %1913 = vmatprep.subr.mxu0 0.0
    %1914 = vmatpush1.msra.mxu0 0.0
    %1915 = vmatprep.subr.mxu0 0.0
    %1916 = vmatpush1.msra.mxu0 0.0
    %1917 = vmatprep.subr.mxu0 0.0
    %1918 = vmatpush1.msra.mxu0 0.0
    %1919 = vmatprep.subr.mxu0 0.0
    %1920 = vmatpush1.msra.mxu0 0.0
    %1921 = vmatprep.subr.mxu0 0.0
    %1922 = vmatpush1.msra.mxu0 0.0
    %1923 = vmatprep.subr.mxu0 0.0
    %1924 = vmatpush1.msra.mxu0 0.0
    %1925 = vmatprep.mubr.f32.mxu0 0.0
    %1926 = vmatmul.mubr.f32.gmra.mrb[0].mxu0 %v1859
    %v1927 = vpop.f32.mrb[0].mxu0
    %v1928 = vadd.f32 0.0, %v1927
    %v1929 = vpop.f32.mrb[0].mxu0
    %v1930 = vadd.f32 0.0, %v1929
    %1931 = vdwg.mxu0
    %v1932 = vadd.f32 %v1824, %v1928
    %v1933 = vadd.f32 %v1825, %v1930
    %s1934 = scalar_lea.vmem %s8, 768
    %v1935 = vld [vmem:[%s1934] sm:$0xff]
    %v1936 = vld [vmem:[%s1934 + $0x8] sm:$0xff]
    %v1937 = vld [vmem:[%s1934 + $0x10] sm:$0xff]
    %v1938 = vld [vmem:[%s1934 + $0x18] sm:$0xff]
    %v1939 = vld [vmem:[%s1934 + $0x20] sm:$0xff]
    %v1940 = vld [vmem:[%s1934 + $0x28] sm:$0xff]
    %v1941 = vld [vmem:[%s1934 + $0x30] sm:$0xff]
    %v1942 = vld [vmem:[%s1934 + $0x38] sm:$0xff]
    %v1943 = vld [vmem:[%s1934 + $0x40] sm:$0xff]
    %v1944 = vld [vmem:[%s1934 + $0x48] sm:$0xff]
    %v1945 = vld [vmem:[%s1934 + $0x50] sm:$0xff]
    %v1946 = vld [vmem:[%s1934 + $0x58] sm:$0xff]
    %v1947 = vld [vmem:[%s1934 + $0x60] sm:$0xff]
    %v1948 = vld [vmem:[%s1934 + $0x68] sm:$0xff]
    %v1949 = vld [vmem:[%s1934 + $0x70] sm:$0xff]
    %v1950 = vld [vmem:[%s1934 + $0x78] sm:$0xff]
    %v1951 = vld [vmem:[%s1934 + $0x80] sm:$0xff]
    %v1952 = vld [vmem:[%s1934 + $0x88] sm:$0xff]
    %v1953 = vld [vmem:[%s1934 + $0x90] sm:$0xff]
    %v1954 = vld [vmem:[%s1934 + $0x98] sm:$0xff]
    %v1955 = vld [vmem:[%s1934 + $0xa0] sm:$0xff]
    %v1956 = vld [vmem:[%s1934 + $0xa8] sm:$0xff]
    %v1957 = vld [vmem:[%s1934 + $0xb0] sm:$0xff]
    %v1958 = vld [vmem:[%s1934 + $0xb8] sm:$0xff]
    %v1959 = vld [vmem:[%s1934 + $0xc0] sm:$0xff]
    %v1960 = vld [vmem:[%s1934 + $0xc8] sm:$0xff]
    %v1961 = vld [vmem:[%s1934 + $0xd0] sm:$0xff]
    %v1962 = vld [vmem:[%s1934 + $0xd8] sm:$0xff]
    %v1963 = vld [vmem:[%s1934 + $0xe0] sm:$0xff]
    %v1964 = vld [vmem:[%s1934 + $0xe8] sm:$0xff]
    %v1965 = vld [vmem:[%s1934 + $0xf0] sm:$0xff]
    %v1966 = vld [vmem:[%s1934 + $0xf8] sm:$0xff]
    %v1967 = vrot.slane %v1592, 6
    %1969 = vmatprep.subr.mxu0 %v1936
    %1970 = vmatpush1.msra.mxu0 %v1935
    %1971 = vmatprep.subr.mxu0 %v1938
    %1972 = vmatpush1.msra.mxu0 %v1937
    %1973 = vmatprep.subr.mxu0 %v1940
    %1974 = vmatpush1.msra.mxu0 %v1939
    %1975 = vmatprep.subr.mxu0 %v1942
    %1976 = vmatpush1.msra.mxu0 %v1941
    %1977 = vmatprep.subr.mxu0 %v1944
    %1978 = vmatpush1.msra.mxu0 %v1943
    %1979 = vmatprep.subr.mxu0 %v1946
    %1980 = vmatpush1.msra.mxu0 %v1945
    %1981 = vmatprep.subr.mxu0 %v1948
    %1982 = vmatpush1.msra.mxu0 %v1947
    %1983 = vmatprep.subr.mxu0 %v1950
    %1984 = vmatpush1.msra.mxu0 %v1949
    %1985 = vmatprep.subr.mxu0 %v1952
    %1986 = vmatpush1.msra.mxu0 %v1951
    %1987 = vmatprep.subr.mxu0 %v1954
    %1988 = vmatpush1.msra.mxu0 %v1953
    %1989 = vmatprep.subr.mxu0 %v1956
    %1990 = vmatpush1.msra.mxu0 %v1955
    %1991 = vmatprep.subr.mxu0 %v1958
    %1992 = vmatpush1.msra.mxu0 %v1957
    %1993 = vmatprep.subr.mxu0 %v1960
    %1994 = vmatpush1.msra.mxu0 %v1959
    %1995 = vmatprep.subr.mxu0 %v1962
    %1996 = vmatpush1.msra.mxu0 %v1961
    %1997 = vmatprep.subr.mxu0 %v1964
    %1998 = vmatpush1.msra.mxu0 %v1963
    %1999 = vmatprep.subr.mxu0 %v1966
    %2000 = vmatpush1.msra.mxu0 %v1965
    %2001 = vmatprep.subr.mxu0 0.0
    %2002 = vmatpush1.msra.mxu0 0.0
    %2003 = vmatprep.subr.mxu0 0.0
    %2004 = vmatpush1.msra.mxu0 0.0
    %2005 = vmatprep.subr.mxu0 0.0
    %2006 = vmatpush1.msra.mxu0 0.0
    %2007 = vmatprep.subr.mxu0 0.0
    %2008 = vmatpush1.msra.mxu0 0.0
    %2009 = vmatprep.subr.mxu0 0.0
    %2010 = vmatpush1.msra.mxu0 0.0
    %2011 = vmatprep.subr.mxu0 0.0
    %2012 = vmatpush1.msra.mxu0 0.0
    %2013 = vmatprep.subr.mxu0 0.0
    %2014 = vmatpush1.msra.mxu0 0.0
    %2015 = vmatprep.subr.mxu0 0.0
    %2016 = vmatpush1.msra.mxu0 0.0
    %2017 = vmatprep.subr.mxu0 0.0
    %2018 = vmatpush1.msra.mxu0 0.0
    %2019 = vmatprep.subr.mxu0 0.0
    %2020 = vmatpush1.msra.mxu0 0.0
    %2021 = vmatprep.subr.mxu0 0.0
    %2022 = vmatpush1.msra.mxu0 0.0
    %2023 = vmatprep.subr.mxu0 0.0
    %2024 = vmatpush1.msra.mxu0 0.0
    %2025 = vmatprep.subr.mxu0 0.0
    %2026 = vmatpush1.msra.mxu0 0.0
    %2027 = vmatprep.subr.mxu0 0.0
    %2028 = vmatpush1.msra.mxu0 0.0
    %2029 = vmatprep.subr.mxu0 0.0
    %2030 = vmatpush1.msra.mxu0 0.0
    %2031 = vmatprep.subr.mxu0 0.0
    %2032 = vmatpush1.msra.mxu0 0.0
    %2033 = vmatprep.mubr.f32.mxu0 0.0
    %2034 = vmatmul.mubr.f32.gmra.mrb[0].mxu0 %v1967
    %v2035 = vpop.f32.mrb[0].mxu0
    %v2036 = vadd.f32 0.0, %v2035
    %v2037 = vpop.f32.mrb[0].mxu0
    %v2038 = vadd.f32 0.0, %v2037
    %2039 = vdwg.mxu0
    %v2040 = vadd.f32 %v1932, %v2036
    %v2041 = vadd.f32 %v1933, %v2038
    %s2042 = scalar_lea.vmem %s8, 1024
    %v2043 = vld [vmem:[%s2042] sm:$0xff]
    %v2044 = vld [vmem:[%s2042 + $0x8] sm:$0xff]
    %v2045 = vld [vmem:[%s2042 + $0x10] sm:$0xff]
    %v2046 = vld [vmem:[%s2042 + $0x18] sm:$0xff]
    %v2047 = vld [vmem:[%s2042 + $0x20] sm:$0xff]
    %v2048 = vld [vmem:[%s2042 + $0x28] sm:$0xff]
    %v2049 = vld [vmem:[%s2042 + $0x30] sm:$0xff]
    %v2050 = vld [vmem:[%s2042 + $0x38] sm:$0xff]
    %v2051 = vld [vmem:[%s2042 + $0x40] sm:$0xff]
    %v2052 = vld [vmem:[%s2042 + $0x48] sm:$0xff]
    %v2053 = vld [vmem:[%s2042 + $0x50] sm:$0xff]
    %v2054 = vld [vmem:[%s2042 + $0x58] sm:$0xff]
    %v2055 = vld [vmem:[%s2042 + $0x60] sm:$0xff]
    %v2056 = vld [vmem:[%s2042 + $0x68] sm:$0xff]
    %v2057 = vld [vmem:[%s2042 + $0x70] sm:$0xff]
    %v2058 = vld [vmem:[%s2042 + $0x78] sm:$0xff]
    %v2059 = vld [vmem:[%s2042 + $0x80] sm:$0xff]
    %v2060 = vld [vmem:[%s2042 + $0x88] sm:$0xff]
    %v2061 = vld [vmem:[%s2042 + $0x90] sm:$0xff]
    %v2062 = vld [vmem:[%s2042 + $0x98] sm:$0xff]
    %v2063 = vld [vmem:[%s2042 + $0xa0] sm:$0xff]
    %v2064 = vld [vmem:[%s2042 + $0xa8] sm:$0xff]
    %v2065 = vld [vmem:[%s2042 + $0xb0] sm:$0xff]
    %v2066 = vld [vmem:[%s2042 + $0xb8] sm:$0xff]
    %v2067 = vld [vmem:[%s2042 + $0xc0] sm:$0xff]
    %v2068 = vld [vmem:[%s2042 + $0xc8] sm:$0xff]
    %v2069 = vld [vmem:[%s2042 + $0xd0] sm:$0xff]
    %v2070 = vld [vmem:[%s2042 + $0xd8] sm:$0xff]
    %v2071 = vld [vmem:[%s2042 + $0xe0] sm:$0xff]
    %v2072 = vld [vmem:[%s2042 + $0xe8] sm:$0xff]
    %v2073 = vld [vmem:[%s2042 + $0xf0] sm:$0xff]
    %v2074 = vld [vmem:[%s2042 + $0xf8] sm:$0xff]
    %2075 = vmatprep.subr.mxu0 %v2044
    %2076 = vmatpush1.msra.mxu0 %v2043
    %2077 = vmatprep.subr.mxu0 %v2046
    %2078 = vmatpush1.msra.mxu0 %v2045
    %2079 = vmatprep.subr.mxu0 %v2048
    %2080 = vmatpush1.msra.mxu0 %v2047
    %2081 = vmatprep.subr.mxu0 %v2050
    %2082 = vmatpush1.msra.mxu0 %v2049
    %2083 = vmatprep.subr.mxu0 %v2052
    %2084 = vmatpush1.msra.mxu0 %v2051
    %2085 = vmatprep.subr.mxu0 %v2054
    %2086 = vmatpush1.msra.mxu0 %v2053
    %2087 = vmatprep.subr.mxu0 %v2056
    %2088 = vmatpush1.msra.mxu0 %v2055
    %2089 = vmatprep.subr.mxu0 %v2058
    %2090 = vmatpush1.msra.mxu0 %v2057
    %2091 = vmatprep.subr.mxu0 %v2060
    %2092 = vmatpush1.msra.mxu0 %v2059
    %2093 = vmatprep.subr.mxu0 %v2062
    %2094 = vmatpush1.msra.mxu0 %v2061
    %2095 = vmatprep.subr.mxu0 %v2064
    %2096 = vmatpush1.msra.mxu0 %v2063
    %2097 = vmatprep.subr.mxu0 %v2066
    %2098 = vmatpush1.msra.mxu0 %v2065
    %2099 = vmatprep.subr.mxu0 %v2068
    %2100 = vmatpush1.msra.mxu0 %v2067
    %2101 = vmatprep.subr.mxu0 %v2070
    %2102 = vmatpush1.msra.mxu0 %v2069
    %2103 = vmatprep.subr.mxu0 %v2072
    %2104 = vmatpush1.msra.mxu0 %v2071
    %2105 = vmatprep.subr.mxu0 %v2074
    %2106 = vmatpush1.msra.mxu0 %v2073
    %2107 = vmatprep.subr.mxu0 0.0
    %2108 = vmatpush1.msra.mxu0 0.0
    %2109 = vmatprep.subr.mxu0 0.0
    %2110 = vmatpush1.msra.mxu0 0.0
    %2111 = vmatprep.subr.mxu0 0.0
    %2112 = vmatpush1.msra.mxu0 0.0
    %2113 = vmatprep.subr.mxu0 0.0
    %2114 = vmatpush1.msra.mxu0 0.0
    %2115 = vmatprep.subr.mxu0 0.0
    %2116 = vmatpush1.msra.mxu0 0.0
    %2117 = vmatprep.subr.mxu0 0.0
    %2118 = vmatpush1.msra.mxu0 0.0
    %2119 = vmatprep.subr.mxu0 0.0
    %2120 = vmatpush1.msra.mxu0 0.0
    %2121 = vmatprep.subr.mxu0 0.0
    %2122 = vmatpush1.msra.mxu0 0.0
    %2123 = vmatprep.subr.mxu0 0.0
    %2124 = vmatpush1.msra.mxu0 0.0
    %2125 = vmatprep.subr.mxu0 0.0
    %2126 = vmatpush1.msra.mxu0 0.0
    %2127 = vmatprep.subr.mxu0 0.0
    %2128 = vmatpush1.msra.mxu0 0.0
    %2129 = vmatprep.subr.mxu0 0.0
    %2130 = vmatpush1.msra.mxu0 0.0
    %2131 = vmatprep.subr.mxu0 0.0
    %2132 = vmatpush1.msra.mxu0 0.0
    %2133 = vmatprep.subr.mxu0 0.0
    %2134 = vmatpush1.msra.mxu0 0.0
    %2135 = vmatprep.subr.mxu0 0.0
    %2136 = vmatpush1.msra.mxu0 0.0
    %2137 = vmatprep.subr.mxu0 0.0
    %2138 = vmatpush1.msra.mxu0 0.0
    %2139 = vmatprep.mubr.f32.mxu0 0.0
    %2140 = vmatmul.mubr.f32.gmra.mrb[0].mxu0 %v1597
    %v2141 = vpop.f32.mrb[0].mxu0
    %v2142 = vadd.f32 0.0, %v2141
    %v2143 = vpop.f32.mrb[0].mxu0
    %v2144 = vadd.f32 0.0, %v2143
    %2145 = vdwg.mxu0
    %v2146 = vadd.f32 %v2040, %v2142
    %v2147 = vadd.f32 %v2041, %v2144
    %v2148 = vmax.f32 %v2146, 0.0
    %v2149 = vmax.f32 %v2147, 0.0
    %v2150 = vld [vmem:[%s10] sm:$0xff]
    %v2151 = vld [vmem:[%s10 + $0x8] sm:$0xff]
    %v2152 = vld [vmem:[%s10 + $0x10] sm:$0xff]
    %v2153 = vld [vmem:[%s10 + $0x18] sm:$0xff]
    %v2154 = vld [vmem:[%s10 + $0x20] sm:$0xff]
    %v2155 = vld [vmem:[%s10 + $0x28] sm:$0xff]
    %v2156 = vld [vmem:[%s10 + $0x30] sm:$0xff]
    %v2157 = vld [vmem:[%s10 + $0x38] sm:$0xff]
    %v2158 = vld [vmem:[%s10 + $0x40] sm:$0xff]
    %v2159 = vld [vmem:[%s10 + $0x48] sm:$0xff]
    %v2160 = vld [vmem:[%s10 + $0x50] sm:$0xff]
    %v2161 = vld [vmem:[%s10 + $0x58] sm:$0xff]
    %v2162 = vld [vmem:[%s10 + $0x60] sm:$0xff]
    %v2163 = vld [vmem:[%s10 + $0x68] sm:$0xff]
    %v2164 = vld [vmem:[%s10 + $0x70] sm:$0xff]
    %v2165 = vld [vmem:[%s10 + $0x78] sm:$0xff]
    %v2166 = vld [vmem:[%s10 + $0x80] sm:$0xff]
    %v2167 = vld [vmem:[%s10 + $0x88] sm:$0xff]
    %v2168 = vld [vmem:[%s10 + $0x90] sm:$0xff]
    %v2169 = vld [vmem:[%s10 + $0x98] sm:$0xff]
    %v2170 = vld [vmem:[%s10 + $0xa0] sm:$0xff]
    %v2171 = vld [vmem:[%s10 + $0xa8] sm:$0xff]
    %v2172 = vld [vmem:[%s10 + $0xb0] sm:$0xff]
    %v2173 = vld [vmem:[%s10 + $0xb8] sm:$0xff]
    %v2174 = vld [vmem:[%s10 + $0xc0] sm:$0xff]
    %v2175 = vld [vmem:[%s11] sm:$0x1]
    %v2177 = vlaneseq
    %v2178 = vshrl.u32 %v2177, 7
    %v2179 = vsub.s32 0, %v2178
    %v2180 = vrot.slane %v2175, %v2179
    %vm2182 = vcmask 588800
    %v2184 = vsel %vm2182, %v2149, 0
    %2186 = vmatprep.subr.mxu0 0.0
    %2187 = vmatpush1.msra.mxu0 %v2150
    %2188 = vmatprep.subr.mxu0 0.0
    %2189 = vmatpush1.msra.mxu0 %v2151
    %2190 = vmatprep.subr.mxu0 0.0
    %2191 = vmatpush1.msra.mxu0 %v2152
    %2192 = vmatprep.subr.mxu0 0.0
    %2193 = vmatpush1.msra.mxu0 %v2153
    %2194 = vmatprep.subr.mxu0 0.0
    %2195 = vmatpush1.msra.mxu0 %v2154
    %2196 = vmatprep.subr.mxu0 0.0
    %2197 = vmatpush1.msra.mxu0 %v2155
    %2198 = vmatprep.subr.mxu0 0.0
    %2199 = vmatpush1.msra.mxu0 %v2156
    %2200 = vmatprep.subr.mxu0 0.0
    %2201 = vmatpush1.msra.mxu0 %v2157
    %2202 = vmatprep.subr.mxu0 0.0
    %2203 = vmatpush1.msra.mxu0 %v2158
    %2204 = vmatprep.subr.mxu0 0.0
    %2205 = vmatpush1.msra.mxu0 %v2159
    %2206 = vmatprep.subr.mxu0 0.0
    %2207 = vmatpush1.msra.mxu0 %v2160
    %2208 = vmatprep.subr.mxu0 0.0
    %2209 = vmatpush1.msra.mxu0 %v2161
    %2210 = vmatprep.subr.mxu0 0.0
    %2211 = vmatpush1.msra.mxu0 %v2162
    %2212 = vmatprep.subr.mxu0 0.0
    %2213 = vmatpush1.msra.mxu0 %v2163
    %2214 = vmatprep.subr.mxu0 0.0
    %2215 = vmatpush1.msra.mxu0 %v2164
    %2216 = vmatprep.subr.mxu0 0.0
    %2217 = vmatpush1.msra.mxu0 %v2165
    %2218 = vmatprep.subr.mxu0 0.0
    %2219 = vmatpush1.msra.mxu0 %v2166
    %2220 = vmatprep.subr.mxu0 0.0
    %2221 = vmatpush1.msra.mxu0 %v2167
    %2222 = vmatprep.subr.mxu0 0.0
    %2223 = vmatpush1.msra.mxu0 %v2168
    %2224 = vmatprep.subr.mxu0 0.0
    %2225 = vmatpush1.msra.mxu0 %v2169
    %2226 = vmatprep.subr.mxu0 0.0
    %2227 = vmatpush1.msra.mxu0 %v2170
    %2228 = vmatprep.subr.mxu0 0.0
    %2229 = vmatpush1.msra.mxu0 %v2171
    %2230 = vmatprep.subr.mxu0 0.0
    %2231 = vmatpush1.msra.mxu0 %v2172
    %2232 = vmatprep.subr.mxu0 0.0
    %2233 = vmatpush1.msra.mxu0 %v2173
    %2234 = vmatprep.subr.mxu0 0.0
    %2235 = vmatpush1.msra.mxu0 %v2174
    %2236 = vmatprep.subr.mxu0 0.0
    %2237 = vmatpush1.msra.mxu0 0.0
    %2238 = vmatprep.subr.mxu0 0.0
    %2239 = vmatpush1.msra.mxu0 0.0
    %2240 = vmatprep.subr.mxu0 0.0
    %2241 = vmatpush1.msra.mxu0 0.0
    %2242 = vmatprep.subr.mxu0 0.0
    %2243 = vmatpush1.msra.mxu0 0.0
    %2244 = vmatprep.subr.mxu0 0.0
    %2245 = vmatpush1.msra.mxu0 0.0
    %2246 = vmatprep.subr.mxu0 0.0
    %2247 = vmatpush1.msra.mxu0 0.0
    %2248 = vmatprep.subr.mxu0 0.0
    %2249 = vmatpush1.msra.mxu0 0.0
    %2250 = vmatprep.mubr.f32.mxu0 %v2184
    %2251 = vmatmul.mubr.f32.gmra.mrb[0].mxu0 %v2148
    %v2252 = vpop.f32.mrb[0].mxu0
    %v2253 = vadd.f32 %v2180, %v2252
    %v2254 = vpop.f32.mrb[0].mxu0
    %2255 = vdwg.mxu0
    %vm2256 = vcmp.lt.s32.totalorder %v1449, 10
    %v2257 = vsel %vm2256, %v2253, -1e+30
    %vm2258 = vcmask 1041408
    %v2259 = vsel %vm2258, %v2257, -inf
    %2260 = vmax.xlane.f32.xlu0 %v2259
    %v2261 = vpop.xlane.xlu0 %2260
    %v2262 = vsub.f32 %v2257, %v2261
    %v2263 = vmul.f32 %v2262, 1.442695
    %v2264 = vpow.pop %v2263
    %v2265 = vsel %vm2258, %v2264, 0.0
    %2266 = vadd.xlane.f32.xlu0 %v2265
    %v2267 = vpop.xlane.xlu0 %2266
    %v2268 = vlog2.pop %v2267
    %v2269 = vmul.f32 %v2268, 0.6931472
    %v2270 = vsub.f32 %v2262, %v2269
    %2271 = vst [vmem:[#allocation2] sm:$0x3] %v2270
    // Predicated region
    $region50: #{lenet_forward.1} parent=1 // pred_check
      _
    $region51: #{lenet_forward.1} parent=1 // pred_check_branch
      %2273 = sbr.rel (0) target = $region53
    $region52: #{lenet_forward.1} parent=1 // pred_region
      %s2275 = ssub.s32 32, 32
      %2276 = vsyncadd [#allocation3], %s2275
      %s2278 = sshll.u32 [#allocation2], 4
      %s2279 = int_to_ptr.vmem [resolvable:$true] %s2278
      %2281 = dma.vmem_to_hbm [thread:$0]  %s2279, 32, %s12, [#allocation3]
    $region53: #{lenet_forward.1} parent=1 // pred_fallthru
      _
    // Predicated region
    $region54: #{lenet_forward.1} parent=1 // pred_check
      _
    $region55: #{lenet_forward.1} parent=1 // pred_check_branch
      %2283 = sbr.rel (0) target = $region57
    $region56: #{lenet_forward.1} parent=1 // pred_region
      %2284 = dma.done [#allocation3], 32
    $region57: #{lenet_forward.1} parent=1 // pred_fallthru
      _
    %2285 = vsyncpa [#allocation3], 1

</llo_original>
